<compile_context>
chip_gen: v6e
topology: v6e:2x2x1
jax: 0.10.0
libtpu: 0.0.40
codegen_flags: <defaults>
</compile_context>

<pallas_src>
import functools

import jax
import jax.numpy as jnp
import numpy as np
from jax import lax
from jax.experimental import pallas as pl
from jax.experimental.pallas import tpu as pltpu

CARDINALITY = 16      # conv2 groups in SECatBottleneckX
SE_REDUCTION = 16     # SeCatLayer reduction
EXPANSION = 4         # SECatBottleneckX.expansion


def _nbytes(a):
    return int(np.prod(a.shape)) * jnp.dtype(a.dtype).itemsize


# ----------------------------------------------------------------------------
# Fused SECatBottleneckX kernel
# ----------------------------------------------------------------------------
def _secat_block_kernel(x_ref, cat_ref, w1_ref, w2k_ref, w3_ref,
                        fc1x_ref, fc1c_ref, fc2_ref, o_ref, *,
                        H, W, Cmid, Cout, has_downsample, mm_dtype):
    f32 = jnp.float32
    HW = H * W
    x = x_ref[0]                                              # (HW, Cin)
    xm = x.astype(mm_dtype)

    # conv1 (1x1) [+ fused residual 1x1 downsample] -- one MXU matmul with a
    # wider N dimension; x is read once.
    if has_downsample:
        t = jnp.dot(xm, w1_ref[...], preferred_element_type=f32)  # (HW, Cout+Cmid)
        res = t[:, :Cout]                                      # downsample branch
        t1 = jnp.maximum(t[:, Cout:], 0.0)                     # conv1 + ReLU
    else:
        t1 = jnp.maximum(jnp.dot(xm, w1_ref[...], preferred_element_type=f32), 0.0)
        res = x.astype(f32)

    # conv2 (3x3, grouped -> block-diagonal dense) as 3 MXU matmuls with
    # K = 3*Cmid.  Column taps are folded into K via pltpu.roll (+/-1 along
    # the flattened HW sublane axis, XLU slot) with edge masks; row taps are
    # whole-row rolls by +/-W.  No halo scratch, no zero-fill, no misaligned
    # tile-crossing tap copies.  Rolls are done in f32 (cast to mm_dtype only
    # at the dot operands).
    idx = lax.broadcasted_iota(jnp.int32, (HW, 1), 0)
    col = idx % W
    zero = jnp.zeros((), f32)
    left = jnp.where(col == 0, zero, pltpu.roll(t1, 1, axis=0))            # t1[h, w-1]
    right = jnp.where(col == W - 1, zero, pltpu.roll(t1, HW - 1, axis=0))  # t1[h, w+1]
    xcat = jnp.concatenate([left, t1, right], axis=-1)                     # (HW, 3*Cmid)
    xup = jnp.where(idx < W, zero, pltpu.roll(xcat, W, axis=0))            # row h-1
    xdn = jnp.where(idx >= (H - 1) * W, zero,
                    pltpu.roll(xcat, HW - W, axis=0))                      # row h+1

    acc = jnp.dot(xup.astype(mm_dtype), w2k_ref[0], preferred_element_type=f32)
    acc = acc + jnp.dot(xcat.astype(mm_dtype), w2k_ref[1], preferred_element_type=f32)
    acc = acc + jnp.dot(xdn.astype(mm_dtype), w2k_ref[2], preferred_element_type=f32)
    t2 = jnp.maximum(acc, 0.0)                                # (HW, Cmid)

    # conv3 (1x1); no ReLU before the SE gate (matches the module).
    t3 = jnp.dot(t2.astype(mm_dtype), w3_ref[...],
                 preferred_element_type=f32)                  # (HW, Cout)

    # Squeeze-Excite gate conditioned on the color/cat feature vector.
    pooled = jnp.mean(t3, axis=0, keepdims=True)              # (1, Cout)
    h = (jnp.dot(pooled, fc1x_ref[...], preferred_element_type=f32) +
         jnp.dot(cat_ref[0].astype(f32), fc1c_ref[...],
                 preferred_element_type=f32))                 # (1, Chid)
    h = jnp.maximum(h, 0.0)
    gate = jax.nn.sigmoid(jnp.dot(h, fc2_ref[...], preferred_element_type=f32))

    out = jnp.maximum(t3 * gate + res, 0.0)
    o_ref[0] = out.astype(o_ref.dtype)


def secat_bottleneck_block(x_flat, cat_feature, p, *, H, W):
    """One fused SECatBottleneckX. x_flat: (N, H*W, Cin) -> (N, H*W, Cout)."""
    N, HW, Cin = x_flat.shape
    mm_dtype = p['mm_dtype']
    Cmid, Cout = p['cmid'], p['cout']
    Chid = p['fc2'].shape[0]
    Ccat = p['fc1c'].shape[0]
    has_ds = p['has_downsample']
    C1 = p['w1'].shape[1]                     # Cmid, or Cout + Cmid when fused

    cat3 = cat_feature.reshape(N, 1, Ccat).astype(jnp.float32)

    inputs = [x_flat, cat3, p['w1'], p['w2k'], p['w3'],
              p['fc1x'], p['fc1c'], p['fc2']]
    in_specs = [
        pl.BlockSpec((1, HW, Cin), lambda n: (n, 0, 0)),
        pl.BlockSpec((1, 1, Ccat), lambda n: (n, 0, 0)),
        pl.BlockSpec((Cin, C1), lambda n: (0, 0)),
        pl.BlockSpec((3, 3 * Cmid, Cmid), lambda n: (0, 0, 0)),
        pl.BlockSpec((Cmid, Cout), lambda n: (0, 0)),
        pl.BlockSpec((Cout, Chid), lambda n: (0, 0)),
        pl.BlockSpec((Ccat, Chid), lambda n: (0, 0)),
        pl.BlockSpec((Chid, Cout), lambda n: (0, 0)),
    ]

    # Cost estimate with true dtype byte counts (scheduling hint for XLA).
    flops_per = (2 * HW * (Cin * C1 + 9 * Cmid * Cmid + Cmid * Cout)
                 + 2 * (Cout + Ccat) * Chid + 2 * Chid * Cout)
    out_bytes = N * HW * Cout * jnp.dtype(x_flat.dtype).itemsize
    cost = pl.CostEstimate(
        flops=int(N * flops_per),
        transcendentals=int(N * Cout),
        bytes_accessed=int(sum(_nbytes(a) for a in inputs) + out_bytes),
    )

    # Explicit VMEM budget: double-buffered per-image blocks + weights +
    # f32/mm_dtype intermediates, with headroom; clamp to v7x physical 64 MiB.
    act_b = jnp.dtype(x_flat.dtype).itemsize
    mm_b = jnp.dtype(mm_dtype).itemsize
    weight_bytes = sum(_nbytes(a) for a in inputs[2:])
    work = HW * (4 * (Cin + C1 + 2 * Cmid + 2 * Cout + 3 * 3 * Cmid)
                 + mm_b * 3 * 3 * Cmid)
    est = 2 * HW * (Cin + Cout) * act_b + 2 * weight_bytes + work + (8 << 20)
    vmem_limit = int(min(max(est, 32 << 20), 64 << 20))

    kern = functools.partial(_secat_block_kernel, H=H, W=W, Cmid=Cmid,
                             Cout=Cout, has_downsample=has_ds,
                             mm_dtype=mm_dtype)

    return pl.pallas_call(
        kern,
        out_shape=jax.ShapeDtypeStruct((N, HW, Cout), x_flat.dtype),
        grid_spec=pltpu.PrefetchScalarGridSpec(
            num_scalar_prefetch=0,
            grid=(N,),
            in_specs=in_specs,
            out_specs=pl.BlockSpec((1, HW, Cout), lambda n: (n, 0, 0)),
        ),
        compiler_params=pltpu.CompilerParams(
            dimension_semantics=("parallel",),
            vmem_limit_bytes=vmem_limit),
        cost_estimate=cost,
    )(*inputs)


# ----------------------------------------------------------------------------
# Parameter init (PyTorch layout) and one-time kernel-ready packing
# ----------------------------------------------------------------------------
def init_decoder_block_params(key, inplanes, planes, color_fc_out, block_num):
    """Weights for DecoderBlock(inplanes, planes, color_fc_out, block_num, no_bn=True)."""
    planes_mid = planes // EXPANSION          # make_secat_layer passes planes // 4
    outplanes = planes_mid * EXPANSION        # == planes (block.expansion = 4)
    hidden = outplanes // SE_REDUCTION
    cpg = planes_mid // CARDINALITY           # in-channels per conv2 group

    def uniform(k, shape, fan_in):
        bound = (1.0 / fan_in) ** 0.5
        return jax.random.uniform(k, shape, jnp.float32, -bound, bound)

    blocks = []
    cin = inplanes
    for _ in range(block_num):
        key, k1, k2, k3, k4, k5, k6 = jax.random.split(key, 7)
        blocks.append({
            'groups': CARDINALITY,
            'w1': uniform(k1, (cin, planes_mid), cin),                 # conv1 1x1
            'w2g': uniform(k2, (3, 3, cpg, planes_mid), 9 * cpg),      # conv2 grouped (HWIO)
            'w3': uniform(k3, (planes_mid, outplanes), planes_mid),    # conv3 1x1
            'fc1': uniform(k4, (outplanes + color_fc_out, hidden),
                           outplanes + color_fc_out),                  # SE fc1 (no bias)
            'fc2': uniform(k5, (hidden, outplanes), hidden),           # SE fc2 (no bias)
            'wd': (uniform(k6, (cin, outplanes), cin)
                   if cin != outplanes else None),                     # 1x1 downsample
        })
        cin = outplanes
    return {'blocks': blocks}


def _grouped_to_dense(w_g, groups):
    """Grouped HWIO (3,3,cpg,Cout) -> block-diagonal dense (3,3,Cin,Cout) (numpy)."""
    kh, kw, cpg, cout = w_g.shape
    cin = cpg * groups
    opg = cout // groups
    dense = np.zeros((kh, kw, cin, cout), np.float32)
    wg = np.asarray(w_g, np.float32)
    for g in range(groups):
        dense[:, :, g * cpg:(g + 1) * cpg, g * opg:(g + 1) * opg] = \
            wg[:, :, :, g * opg:(g + 1) * opg]
    return dense


def prepare_decoder_block_params(params, mm_dtype=jnp.float32):
    """One-time packing: grouped->dense taps stacked along K per kernel row,
    fc1 split into pooled/cat halves, optional downsample fused into conv1,
    and pre-cast of the big conv weights to mm_dtype (use bf16 on TPU)."""
    blocks = []
    for p in params['blocks']:
        Cmid = p['w1'].shape[1]
        Cout = p['w3'].shape[1]
        dense = _grouped_to_dense(p['w2g'], p['groups'])     # (3, 3, Cmid, Cmid)
        w2k = dense.reshape(3, 3 * Cmid, Cmid)               # K index = kx*Cmid + cin
        has_ds = p['wd'] is not None
        if has_ds:
            # [downsample | conv1] along the output dim -> one conv1 matmul.
            w1 = np.concatenate([np.asarray(p['wd'], np.float32),
                                 np.asarray(p['w1'], np.float32)], axis=1)
        else:
            w1 = np.asarray(p['w1'], np.float32)
        fc1 = np.asarray(p['fc1'], np.float32)
        blocks.append({
            'has_downsample': has_ds,
            'cmid': Cmid,
            'cout': Cout,
            'mm_dtype': mm_dtype,
            'w1': jnp.asarray(w1, mm_dtype),
            'w2k': jnp.asarray(w2k, mm_dtype),
            'w3': jnp.asarray(np.asarray(p['w3'], np.float32), mm_dtype),
            'fc1x': jnp.asarray(fc1[:Cout], jnp.float32),    # pooled half
            'fc1c': jnp.asarray(fc1[Cout:], jnp.float32),    # cat_feature half
            'fc2': jnp.asarray(np.asarray(p['fc2'], np.float32), jnp.float32),
        })
    return {'blocks': blocks, 'mm_dtype': mm_dtype}


# ----------------------------------------------------------------------------
# DecoderBlock forward and PixelShuffle glue
# ----------------------------------------------------------------------------
def _pixel_shuffle_from_nhwc(x_nhwc, r=2):
    """NHWC input with C = c*r*r (PyTorch channel order) -> pixel-shuffled NCHW."""
    N, H, W, C = x_nhwc.shape
    c = C // (r * r)
    x = x_nhwc.reshape(N, H, W, c, r, r)
    x = jnp.transpose(x, (0, 3, 1, 4, 2, 5))     # N, c, H, r, W, r
    return x.reshape(N, c, H * r, W * r)


def decoder_block_forward(x_nchw, cat_feature, prep_params, *, act_dtype=None,
                          no_bn=True):
    """DecoderBlock.forward(x, cat_feature): SECat bottleneck stack -> PixelShuffle(2).

    prep_params: output of prepare_decoder_block_params (call once, cache).
    act_dtype: dtype of the inter-block (N, H*W, C) activation slabs
               (use jnp.bfloat16 on TPU together with mm_dtype=bfloat16).
    """
    assert no_bn, "only the no_bn=True path is implemented"
    N, C, H, W = x_nchw.shape
    x = jnp.transpose(x_nchw, (0, 2, 3, 1)).reshape(N, H * W, C)  # NCHW -> flat NHWC
    if act_dtype is not None:
        x = x.astype(act_dtype)
    for p in prep_params['blocks']:
        x = secat_bottleneck_block(x, cat_feature, p, H=H, W=W)
    x = x.reshape(N, H, W, -1)
    return _pixel_shuffle_from_nhwc(x, 2)                          # -> NCHW


# ----------------------------------------------------------------------------
# Pure-JAX reference (lax.conv) for correctness checking
# ----------------------------------------------------------------------------
def _conv1x1_nchw(x, w):
    return lax.conv_general_dilated(
        x, w[None, None], window_strides=(1, 1), padding='VALID',
        dimension_numbers=('NCHW', 'HWIO', 'NCHW'),
        precision=lax.Precision.HIGHEST)


def _ref_block(x, cat_feature, p):
    t = jnp.maximum(_conv1x1_nchw(x, p['w1']), 0.0)
    t = lax.conv_general_dilated(
        t, p['w2g'], window_strides=(1, 1), padding=((1, 1), (1, 1)),
        dimension_numbers=('NCHW', 'HWIO', 'NCHW'),
        feature_group_count=p['groups'], precision=lax.Precision.HIGHEST)
    t = jnp.maximum(t, 0.0)
    t = _conv1x1_nchw(t, p['w3'])
    pooled = jnp.mean(t, axis=(2, 3))                        # AdaptiveAvgPool2d(1)
    y = jnp.concatenate([pooled, cat_feature], axis=1)
    h = jnp.maximum(jnp.dot(y, p['fc1'], precision=lax.Precision.HIGHEST), 0.0)
    gate = jax.nn.sigmoid(jnp.dot(h, p['fc2'], precision=lax.Precision.HIGHEST))
    t = t * gate[:, :, None, None]
    res = _conv1x1_nchw(x, p['wd']) if p['wd'] is not None else x
    return jnp.maximum(t + res, 0.0)


def _pixel_shuffle_nchw(x, r=2):
    N, C, H, W = x.shape
    x = x.reshape(N, C // (r * r), r, r, H, W)
    x = jnp.transpose(x, (0, 1, 4, 2, 5, 3))
    return x.reshape(N, C // (r * r), H * r, W * r)


def _ref_forward(x_nchw, cat_feature, params):
    y = x_nchw
    for p in params['blocks']:
        y = _ref_block(y, cat_feature, p)
    return _pixel_shuffle_nchw(y, 2)


if __name__ == "__main__":
    key = jax.random.PRNGKey(0)
    kx, kc, kp = jax.random.split(key, 3)

    # Small shapes consistent with the module: planes divisible by 4,
    # planes//4 by the cardinality (16), planes by the SE reduction (16).
    N, INPLANES, PLANES, COLOR_FC, BLOCK_NUM, H = 2, 32, 64, 8, 2, 8

    x = jax.random.normal(kx, (N, INPLANES, H, H), jnp.float32)
    cat_feature = jax.random.normal(kc, (N, COLOR_FC), jnp.float32)
    params = init_decoder_block_params(kp, INPLANES, PLANES, COLOR_FC, BLOCK_NUM)
    ref = _ref_forward(x, cat_feature, params)

    # f32 MXU path: numerics match the f32 reference tightly.
    prep_f32 = prepare_decoder_block_params(params, mm_dtype=jnp.float32)
    out = decoder_block_forward(x, cat_feature, prep_f32)
    out = jax.block_until_ready(out)
    assert out.shape == (N, PLANES // 4, 2 * H, 2 * H), out.shape
    np.testing.assert_allclose(np.asarray(out), np.asarray(ref),
                               rtol=1e-4, atol=1e-4)

    # bf16 MXU path (recommended on v5e/v6e/v7x): pre-cast weights + bf16
    # activations, f32 accumulation. Looser tolerance is expected precision
    # loss vs the f32 reference, not a kernel bug.
    prep_bf16 = prepare_decoder_block_params(params, mm_dtype=jnp.bfloat16)
    out_bf16 = decoder_block_forward(x, cat_feature, prep_bf16,
                                     act_dtype=jnp.bfloat16)
    out_bf16 = jax.block_until_ready(out_bf16)
    np.testing.assert_allclose(np.asarray(out_bf16.astype(jnp.float32)),
                               np.asarray(ref), rtol=1e-1, atol=1e-1)

    print("KERNEL_OK")
</pallas_src>

<mosaic_0001>
module attributes {stable_mosaic.version = 11 : i64} {
  func.func @_secat_block_kernel(%arg0: i32, %arg1: memref<1x64x32xf32, #tpu.memory_space<vmem>>, %arg2: memref<1x1x8xf32, #tpu.memory_space<vmem>>, %arg3: memref<32x80xf32, #tpu.memory_space<vmem>>, %arg4: memref<3x48x16xf32, #tpu.memory_space<vmem>>, %arg5: memref<16x64xf32, #tpu.memory_space<vmem>>, %arg6: memref<64x4xf32, #tpu.memory_space<vmem>>, %arg7: memref<8x4xf32, #tpu.memory_space<vmem>>, %arg8: memref<4x64xf32, #tpu.memory_space<vmem>>, %arg9: memref<1x64x64xf32, #tpu.memory_space<vmem>>) attributes {dimension_semantics = [#tpu.dimension_semantics<parallel>], iteration_bounds = array<i64: 2>, scalar_prefetch = 0 : i64, scratch_operands = 0 : i64, tpu.core_type = #tpu.core_type<tc>, window_params = [{transform_indices = @transform_0, window_bounds = array<i64: 1, 64, 32>}, {transform_indices = @transform_1, window_bounds = array<i64: 1, 1, 8>}, {pipeline_mode = #tpu.pipeline_mode<synchronous>, transform_indices = @transform_2, window_bounds = array<i64: 32, 80>}, {pipeline_mode = #tpu.pipeline_mode<synchronous>, transform_indices = @transform_3, window_bounds = array<i64: 3, 48, 16>}, {pipeline_mode = #tpu.pipeline_mode<synchronous>, transform_indices = @transform_4, window_bounds = array<i64: 16, 64>}, {pipeline_mode = #tpu.pipeline_mode<synchronous>, transform_indices = @transform_5, window_bounds = array<i64: 64, 4>}, {pipeline_mode = #tpu.pipeline_mode<synchronous>, transform_indices = @transform_6, window_bounds = array<i64: 8, 4>}, {pipeline_mode = #tpu.pipeline_mode<synchronous>, transform_indices = @transform_7, window_bounds = array<i64: 4, 64>}, {transform_indices = @transform_8, window_bounds = array<i64: 1, 64, 64>}]} {
    %c0 = arith.constant 0 : index
    %c0_0 = arith.constant 0 : index
    %c0_1 = arith.constant 0 : index
    %0 = vector.load %arg1[%c0, %c0_0, %c0_1] : memref<1x64x32xf32, #tpu.memory_space<vmem>>, vector<1x64x32xf32>
    %1 = vector.shape_cast %0 : vector<1x64x32xf32> to vector<64x32xf32>
    %c0_2 = arith.constant 0 : index
    %c0_3 = arith.constant 0 : index
    %2 = vector.load %arg3[%c0_2, %c0_3] : memref<32x80xf32, #tpu.memory_space<vmem>>, vector<32x80xf32>
    %cst = arith.constant dense<0.000000e+00> : vector<64x80xf32>
    %3 = tpu.matmul %1, %2, %cst {dimension_numbers = #tpu.dot_dimension_numbers<[1], [0], [0], [1], [0, 0, 1, 1], [], []>} : vector<64x32xf32>, vector<32x80xf32>, vector<64x80xf32> -> vector<64x80xf32>
    %4 = vector.extract_strided_slice %3 {offsets = [0, 0], sizes = [64, 64], strides = [1, 1]} : vector<64x80xf32> to vector<64x64xf32>
    %5 = vector.extract_strided_slice %3 {offsets = [0, 64], sizes = [64, 16], strides = [1, 1]} : vector<64x80xf32> to vector<64x16xf32>
    %cst_4 = arith.constant 0.000000e+00 : f32
    %6 = vector.broadcast %cst_4 : f32 to vector<64x16xf32>
    %7 = arith.maximumf %5, %6 : vector<64x16xf32>
    %8 = tpu.iota {dimensions = array<i32: 0>} : vector<64x1xi32>
    %c8_i32 = arith.constant 8 : i32
    %c0_i32 = arith.constant 0 : i32
    %9 = arith.cmpi eq, %c8_i32, %c0_i32 : i32
    %c1_i32 = arith.constant 1 : i32
    %10 = arith.select %9, %c1_i32, %c8_i32 : i32
    %11 = vector.broadcast %10 : i32 to vector<64x1xi32>
    %12 = arith.remsi %8, %11 : vector<64x1xi32>
    %c0_i32_5 = arith.constant 0 : i32
    %13 = vector.broadcast %c0_i32_5 : i32 to vector<64x1xi32>
    %14 = arith.cmpi ne, %12, %13 : vector<64x1xi32>
    %c0_i32_6 = arith.constant 0 : i32
    %15 = vector.broadcast %c0_i32_6 : i32 to vector<64x1xi32>
    %16 = arith.cmpi slt, %12, %15 : vector<64x1xi32>
    %c0_i32_7 = arith.constant 0 : i32
    %17 = arith.cmpi slt, %10, %c0_i32_7 : i32
    %18 = vector.broadcast %17 : i1 to vector<64x1xi1>
    %19 = vector.broadcast %18 : vector<64x1xi1> to vector<64x1xi1>
    %20 = arith.xori %16, %19 : vector<64x1xi1>
    %21 = arith.andi %20, %14 : vector<64x1xi1>
    %22 = vector.broadcast %10 : i32 to vector<64x1xi32>
    %23 = arith.addi %12, %22 : vector<64x1xi32>
    %24 = arith.select %21, %23, %12 : vector<64x1xi1>, vector<64x1xi32>
    %c0_i32_8 = arith.constant 0 : i32
    %25 = vector.broadcast %c0_i32_8 : i32 to vector<64x1xi32>
    %26 = arith.cmpi eq, %24, %25 : vector<64x1xi32>
    %c1_i32_9 = arith.constant 1 : i32
    %27 = tpu.dynamic_rotate %7 by %c1_i32_9 dim 0 : vector<64x16xf32>, i32 -> vector<64x16xf32>
    %cst_10 = arith.constant 0.000000e+00 : f32
    %28 = vector.shape_cast %26 : vector<64x1xi1> to vector<64x1xi1>
    %29 = vector.broadcast %28 : vector<64x1xi1> to vector<64x16xi1>
    %30 = vector.broadcast %cst_10 : f32 to vector<64x16xf32>
    %31 = arith.select %29, %30, %27 : vector<64x16xi1>, vector<64x16xf32>
    %c7_i32 = arith.constant 7 : i32
    %32 = vector.broadcast %c7_i32 : i32 to vector<64x1xi32>
    %33 = arith.cmpi eq, %24, %32 : vector<64x1xi32>
    %c63_i32 = arith.constant 63 : i32
    %34 = tpu.dynamic_rotate %7 by %c63_i32 dim 0 : vector<64x16xf32>, i32 -> vector<64x16xf32>
    %cst_11 = arith.constant 0.000000e+00 : f32
    %35 = vector.shape_cast %33 : vector<64x1xi1> to vector<64x1xi1>
    %36 = vector.broadcast %35 : vector<64x1xi1> to vector<64x16xi1>
    %37 = vector.broadcast %cst_11 : f32 to vector<64x16xf32>
    %38 = arith.select %36, %37, %34 : vector<64x16xi1>, vector<64x16xf32>
    %39 = tpu.concatenate %31, %7, %38 in 1 : vector<64x16xf32>, vector<64x16xf32>, vector<64x16xf32> -> vector<64x48xf32>
    %c8_i32_12 = arith.constant 8 : i32
    %40 = vector.broadcast %c8_i32_12 : i32 to vector<64x1xi32>
    %41 = arith.cmpi slt, %8, %40 : vector<64x1xi32>
    %c8_i32_13 = arith.constant 8 : i32
    %42 = tpu.dynamic_rotate %39 by %c8_i32_13 dim 0 : vector<64x48xf32>, i32 -> vector<64x48xf32>
    %cst_14 = arith.constant 0.000000e+00 : f32
    %43 = vector.shape_cast %41 : vector<64x1xi1> to vector<64x1xi1>
    %44 = vector.broadcast %43 : vector<64x1xi1> to vector<64x48xi1>
    %45 = vector.broadcast %cst_14 : f32 to vector<64x48xf32>
    %46 = arith.select %44, %45, %42 : vector<64x48xi1>, vector<64x48xf32>
    %c56_i32 = arith.constant 56 : i32
    %47 = vector.broadcast %c56_i32 : i32 to vector<64x1xi32>
    %48 = arith.cmpi sge, %8, %47 : vector<64x1xi32>
    %c56_i32_15 = arith.constant 56 : i32
    %49 = tpu.dynamic_rotate %39 by %c56_i32_15 dim 0 : vector<64x48xf32>, i32 -> vector<64x48xf32>
    %cst_16 = arith.constant 0.000000e+00 : f32
    %50 = vector.shape_cast %48 : vector<64x1xi1> to vector<64x1xi1>
    %51 = vector.broadcast %50 : vector<64x1xi1> to vector<64x48xi1>
    %52 = vector.broadcast %cst_16 : f32 to vector<64x48xf32>
    %53 = arith.select %51, %52, %49 : vector<64x48xi1>, vector<64x48xf32>
    %c0_17 = arith.constant 0 : index
    %c0_18 = arith.constant 0 : index
    %c0_19 = arith.constant 0 : index
    %54 = vector.load %arg4[%c0_17, %c0_18, %c0_19] : memref<3x48x16xf32, #tpu.memory_space<vmem>>, vector<1x48x16xf32>
    %55 = vector.shape_cast %54 : vector<1x48x16xf32> to vector<48x16xf32>
    %cst_20 = arith.constant dense<0.000000e+00> : vector<64x16xf32>
    %56 = tpu.matmul %46, %55, %cst_20 {dimension_numbers = #tpu.dot_dimension_numbers<[1], [0], [0], [1], [0, 0, 1, 1], [], []>} : vector<64x48xf32>, vector<48x16xf32>, vector<64x16xf32> -> vector<64x16xf32>
    %c1 = arith.constant 1 : index
    %c0_21 = arith.constant 0 : index
    %c0_22 = arith.constant 0 : index
    %57 = vector.load %arg4[%c1, %c0_21, %c0_22] : memref<3x48x16xf32, #tpu.memory_space<vmem>>, vector<1x48x16xf32>
    %58 = vector.shape_cast %57 : vector<1x48x16xf32> to vector<48x16xf32>
    %cst_23 = arith.constant dense<0.000000e+00> : vector<64x16xf32>
    %59 = tpu.matmul %39, %58, %cst_23 {dimension_numbers = #tpu.dot_dimension_numbers<[1], [0], [0], [1], [0, 0, 1, 1], [], []>} : vector<64x48xf32>, vector<48x16xf32>, vector<64x16xf32> -> vector<64x16xf32>
    %60 = arith.addf %56, %59 : vector<64x16xf32>
    %c2 = arith.constant 2 : index
    %c0_24 = arith.constant 0 : index
    %c0_25 = arith.constant 0 : index
    %61 = vector.load %arg4[%c2, %c0_24, %c0_25] : memref<3x48x16xf32, #tpu.memory_space<vmem>>, vector<1x48x16xf32>
    %62 = vector.shape_cast %61 : vector<1x48x16xf32> to vector<48x16xf32>
    %cst_26 = arith.constant dense<0.000000e+00> : vector<64x16xf32>
    %63 = tpu.matmul %53, %62, %cst_26 {dimension_numbers = #tpu.dot_dimension_numbers<[1], [0], [0], [1], [0, 0, 1, 1], [], []>} : vector<64x48xf32>, vector<48x16xf32>, vector<64x16xf32> -> vector<64x16xf32>
    %64 = arith.addf %60, %63 : vector<64x16xf32>
    %cst_27 = arith.constant 0.000000e+00 : f32
    %65 = vector.broadcast %cst_27 : f32 to vector<64x16xf32>
    %66 = arith.maximumf %64, %65 : vector<64x16xf32>
    %c0_28 = arith.constant 0 : index
    %c0_29 = arith.constant 0 : index
    %67 = vector.load %arg5[%c0_28, %c0_29] : memref<16x64xf32, #tpu.memory_space<vmem>>, vector<16x64xf32>
    %cst_30 = arith.constant dense<0.000000e+00> : vector<64x64xf32>
    %68 = tpu.matmul %66, %67, %cst_30 {dimension_numbers = #tpu.dot_dimension_numbers<[1], [0], [0], [1], [0, 0, 1, 1], [], []>} : vector<64x16xf32>, vector<16x64xf32>, vector<64x64xf32> -> vector<64x64xf32>
    %cst_31 = arith.constant dense<0.000000e+00> : vector<64xf32>
    %69 = vector.multi_reduction <add>, %68, %cst_31 [0] : vector<64x64xf32> to vector<64xf32>
    %70 = vector.shape_cast %69 : vector<64xf32> to vector<1x64xf32>
    %cst_32 = arith.constant 6.400000e+01 : f32
    %71 = vector.broadcast %cst_32 : f32 to vector<1x64xf32>
    %72 = arith.divf %70, %71 : vector<1x64xf32>
    %c0_33 = arith.constant 0 : index
    %c0_34 = arith.constant 0 : index
    %73 = vector.load %arg6[%c0_33, %c0_34] : memref<64x4xf32, #tpu.memory_space<vmem>>, vector<64x4xf32>
    %cst_35 = arith.constant dense<0.000000e+00> : vector<1x4xf32>
    %74 = tpu.matmul %72, %73, %cst_35 {dimension_numbers = #tpu.dot_dimension_numbers<[1], [0], [0], [1], [0, 0, 1, 1], [], []>} : vector<1x64xf32>, vector<64x4xf32>, vector<1x4xf32> -> vector<1x4xf32>
    %c0_36 = arith.constant 0 : index
    %c0_37 = arith.constant 0 : index
    %c0_38 = arith.constant 0 : index
    %75 = vector.load %arg2[%c0_36, %c0_37, %c0_38] : memref<1x1x8xf32, #tpu.memory_space<vmem>>, vector<1x1x8xf32>
    %76 = vector.shape_cast %75 : vector<1x1x8xf32> to vector<1x8xf32>
    %c0_39 = arith.constant 0 : index
    %c0_40 = arith.constant 0 : index
    %77 = vector.load %arg7[%c0_39, %c0_40] : memref<8x4xf32, #tpu.memory_space<vmem>>, vector<8x4xf32>
    %cst_41 = arith.constant dense<0.000000e+00> : vector<1x4xf32>
    %78 = tpu.matmul %76, %77, %cst_41 {dimension_numbers = #tpu.dot_dimension_numbers<[1], [0], [0], [1], [0, 0, 1, 1], [], []>} : vector<1x8xf32>, vector<8x4xf32>, vector<1x4xf32> -> vector<1x4xf32>
    %79 = arith.addf %74, %78 : vector<1x4xf32>
    %cst_42 = arith.constant 0.000000e+00 : f32
    %80 = vector.broadcast %cst_42 : f32 to vector<1x4xf32>
    %81 = arith.maximumf %79, %80 : vector<1x4xf32>
    %c0_43 = arith.constant 0 : index
    %c0_44 = arith.constant 0 : index
    %82 = vector.load %arg8[%c0_43, %c0_44] : memref<4x64xf32, #tpu.memory_space<vmem>>, vector<4x64xf32>
    %cst_45 = arith.constant dense<0.000000e+00> : vector<1x64xf32>
    %83 = tpu.matmul %81, %82, %cst_45 {dimension_numbers = #tpu.dot_dimension_numbers<[1], [0], [0], [1], [0, 0, 1, 1], [], []>} : vector<1x4xf32>, vector<4x64xf32>, vector<1x64xf32> -> vector<1x64xf32>
    %84 = arith.negf %83 : vector<1x64xf32>
    %85 = math.exp %84 : vector<1x64xf32>
    %cst_46 = arith.constant 1.000000e+00 : f32
    %86 = vector.broadcast %cst_46 : f32 to vector<1x64xf32>
    %87 = arith.addf %86, %85 : vector<1x64xf32>
    %88 = arith.divf %86, %87 : vector<1x64xf32>
    %89 = vector.broadcast %88 : vector<1x64xf32> to vector<64x64xf32>
    %90 = arith.mulf %68, %89 : vector<64x64xf32>
    %91 = arith.addf %90, %4 : vector<64x64xf32>
    %cst_47 = arith.constant 0.000000e+00 : f32
    %92 = vector.broadcast %cst_47 : f32 to vector<64x64xf32>
    %93 = arith.maximumf %91, %92 : vector<64x64xf32>
    %c0_48 = arith.constant 0 : index
    %c0_49 = arith.constant 0 : index
    %c0_50 = arith.constant 0 : index
    %94 = vector.load %arg9[%c0_48, %c0_49, %c0_50] : memref<1x64x64xf32, #tpu.memory_space<vmem>>, vector<1x64x64xf32>
    %95 = vector.shape_cast %94 : vector<1x64x64xf32> to vector<64x64xf32>
    %96 = vector.shape_cast %93 : vector<64x64xf32> to vector<1x64x64xf32>
    tpu.vector_store %arg9[%c0_48, %c0_49, %c0_50], %96 {strides = array<i32>} : memref<1x64x64xf32, #tpu.memory_space<vmem>>, vector<1x64x64xf32>,
    return
  }
  func.func @transform_0(%arg0: i32) -> (i32, i32, i32) {
    %c0_i32 = arith.constant 0 : i32
    %c0_i32_0 = arith.constant 0 : i32
    %c0_i32_1 = arith.constant 0 : i32
    return %arg0, %c0_i32, %c0_i32_0 : i32, i32, i32
  }
  func.func @transform_1(%arg0: i32) -> (i32, i32, i32) {
    %c0_i32 = arith.constant 0 : i32
    %c0_i32_0 = arith.constant 0 : i32
    %c0_i32_1 = arith.constant 0 : i32
    return %arg0, %c0_i32, %c0_i32_0 : i32, i32, i32
  }
  func.func @transform_2(%arg0: i32) -> (i32, i32) {
    %c0_i32 = arith.constant 0 : i32
    %c0_i32_0 = arith.constant 0 : i32
    %c0_i32_1 = arith.constant 0 : i32
    return %c0_i32, %c0_i32_0 : i32, i32
  }
  func.func @transform_3(%arg0: i32) -> (i32, i32, i32) {
    %c0_i32 = arith.constant 0 : i32
    %c0_i32_0 = arith.constant 0 : i32
    %c0_i32_1 = arith.constant 0 : i32
    %c0_i32_2 = arith.constant 0 : i32
    return %c0_i32, %c0_i32_0, %c0_i32_1 : i32, i32, i32
  }
  func.func @transform_4(%arg0: i32) -> (i32, i32) {
    %c0_i32 = arith.constant 0 : i32
    %c0_i32_0 = arith.constant 0 : i32
    %c0_i32_1 = arith.constant 0 : i32
    return %c0_i32, %c0_i32_0 : i32, i32
  }
  func.func @transform_5(%arg0: i32) -> (i32, i32) {
    %c0_i32 = arith.constant 0 : i32
    %c0_i32_0 = arith.constant 0 : i32
    %c0_i32_1 = arith.constant 0 : i32
    return %c0_i32, %c0_i32_0 : i32, i32
  }
  func.func @transform_6(%arg0: i32) -> (i32, i32) {
    %c0_i32 = arith.constant 0 : i32
    %c0_i32_0 = arith.constant 0 : i32
    %c0_i32_1 = arith.constant 0 : i32
    return %c0_i32, %c0_i32_0 : i32, i32
  }
  func.func @transform_7(%arg0: i32) -> (i32, i32) {
    %c0_i32 = arith.constant 0 : i32
    %c0_i32_0 = arith.constant 0 : i32
    %c0_i32_1 = arith.constant 0 : i32
    return %c0_i32, %c0_i32_0 : i32, i32
  }
  func.func @transform_8(%arg0: i32) -> (i32, i32, i32) {
    %c0_i32 = arith.constant 0 : i32
    %c0_i32_0 = arith.constant 0 : i32
    %c0_i32_1 = arith.constant 0 : i32
    return %arg0, %c0_i32, %c0_i32_0 : i32, i32, i32
  }
}

</mosaic_0001>

<llo_original>
// kernel: tpu_custom_call.1
$region0: #{tpu_custom_call.1}
  #allocation0 [shape = 'u32[]', space=smem, size = 0x4, offset = 0x4, fixed_abs, tag = 'smem constant byte address 0x4 - core index']
  #allocation1 [shape = 'u32[144,128]{1,0:T(1,128)}', space=vmem, size = 0x12000, scoped, tag = 'internal scratch']
  %s0 = inlined_call_operand.vmem [shape: f32[2,64,32], index: 0, kind: input, shape index: {}]
  %s1 = inlined_call_operand.vmem [shape: f32[2,1,8], index: 1, kind: input, shape index: {}]
  %s2 = inlined_call_operand.vmem [shape: f32[32,80], index: 2, kind: input, shape index: {}]
  %s3 = inlined_call_operand.vmem [shape: f32[3,48,16], index: 3, kind: input, shape index: {}]
  %s4 = inlined_call_operand.vmem [shape: f32[16,64], index: 4, kind: input, shape index: {}]
  %s5 = inlined_call_operand.vmem [shape: f32[64,4], index: 5, kind: input, shape index: {}]
  %s6 = inlined_call_operand.vmem [shape: f32[8,4], index: 6, kind: input, shape index: {}]
  %s7 = inlined_call_operand.vmem [shape: f32[4,64], index: 7, kind: input, shape index: {}]
  %s8 = inlined_call_operand.hbm [shape: f32[2,64,64], index: 8, kind: output, shape index: {}]
  %s9 = sld [smem:[#allocation0]]
  $region65: #{tpu_custom_call.1} parent=0
    _
  %s11 = ssub.s32 1, %s9
  %s12 = scalar_select 0, %s11, %s9
  $region1: #{tpu_custom_call.1} parent=0
    #allocation2 [shape = 'u8[65536]{0}', space=vmem, size = 0x10000, scoped, tag = 'output window, operand 0']
    #allocation3 [shape = 's32[2]{0}', space=sflag, size = 0x8, scoped, tag = 'scoped memory for tpu_custom_call.1']
    %13 = vsyncpa [#allocation3], 0
    %s14 = scalar_lea.sflag [#allocation3], 1
    %15 = vsyncpa %s14, 0
    loop: start=0, step=1, limit=4
    $region2: #{tpu_custom_call.1} parent=1 // loop_pre_header
      _
    $region3: #{tpu_custom_call.1} parent=1 // loop_header
      %s17 = sphi 0, %s21
      %p18 = scmp.ge.s32.totalorder %s17, 4
      %s27 = sphi 0, %s29
      %s30 = sphi 0, %s27
      %s31 = sphi 0, %s30
      %s47 = sphi 0, %s31
      %s53 = sphi 0, %s55
      %s56 = sphi 0, %s53
      %s57 = sphi 0, %s56
      %s73 = sphi 0, %s57
      %s77 = sphi 0, %s77
      %s79 = sphi 0, %s77
      %s80 = sphi 0, %s79
      %s94 = sphi 0, %s80
      %s98 = sphi 0, %s98
      %s100 = sphi 0, %s98
      %s101 = sphi 0, %s100
      %s115 = sphi 0, %s101
      %s119 = sphi 0, %s119
      %s121 = sphi 0, %s119
      %s122 = sphi 0, %s121
      %s136 = sphi 0, %s122
      %s140 = sphi 0, %s140
      %s142 = sphi 0, %s140
      %s143 = sphi 0, %s142
      %s157 = sphi 0, %s143
      %s161 = sphi 0, %s161
      %s163 = sphi 0, %s161
      %s164 = sphi 0, %s163
      %s178 = sphi 0, %s164
      %s182 = sphi 0, %s182
      %s184 = sphi 0, %s182
      %s185 = sphi 0, %s184
      %s199 = sphi 0, %s185
      %s205 = sphi 0, %s207
      %s208 = sphi 0, %s205
      %s209 = sphi 0, %s208
      %s225 = sphi 0, %s209
    $region4: #{tpu_custom_call.1} parent=1 // loop_header_branch
      %20 = sbr.rel (%p18) target = $region8
    $region5: #{tpu_custom_call.1} parent=1 // loop_body
      %s22 = ssub.s32 %s17, 1
      %s23 = ssub.s32 %s17, 2
      %s24 = sadd.s32 %s17, 1
      %s25 = ssub.s32 %s17, %s24
      %p26 = scmp.eq.s32.totalorder %s25, 0
      %s28 = sadd.s32 %s27, 1
      %s29 = scalar_select %p26, %s27, %s28
      %p32 = pneg %p26
      %p33 = scmp.eq.s32.totalorder %s17, 1
      %p34 = por %p32, %p33
      %p35 = scmp.ne.s32.totalorder %s27, %s30
      %p36 = scmp.eq.s32.totalorder %s17, 0
      %p37 = por %p35, %p36
      %p38 = scmp.ne.s32.totalorder %s27, %s30
      %p39 = scmp.eq.s32.totalorder %s22, 1
      %p40 = por %p38, %p39
      %p41 = scmp.ne.s32.totalorder %s30, %s31
      %p42 = scmp.eq.s32.totalorder %s22, 0
      %p43 = por %p41, %p42
      %p44 = scmp.ne.s32.totalorder %s30, %s31
      %p45 = scmp.eq.s32.totalorder %s23, 1
      %p46 = por %p44, %p45
      %p48 = scmp.ne.s32.totalorder %s31, %s47
      %p49 = scmp.eq.s32.totalorder %s23, 0
      %p50 = por %p48, %p49
      %s51 = ssub.s32 %s17, %s24
      %p52 = scmp.eq.s32.totalorder %s51, 0
      %s54 = sadd.s32 %s53, 1
      %s55 = scalar_select %p52, %s53, %s54
      %p58 = pneg %p52
      %p59 = scmp.eq.s32.totalorder %s17, 1
      %p60 = por %p58, %p59
      %p61 = scmp.ne.s32.totalorder %s53, %s56
      %p62 = scmp.eq.s32.totalorder %s17, 0
      %p63 = por %p61, %p62
      %p64 = scmp.ne.s32.totalorder %s53, %s56
      %p65 = scmp.eq.s32.totalorder %s22, 1
      %p66 = por %p64, %p65
      %p67 = scmp.ne.s32.totalorder %s56, %s57
      %p68 = scmp.eq.s32.totalorder %s22, 0
      %p69 = por %p67, %p68
      %p70 = scmp.ne.s32.totalorder %s56, %s57
      %p71 = scmp.eq.s32.totalorder %s23, 1
      %p72 = por %p70, %p71
      %p74 = scmp.ne.s32.totalorder %s57, %s73
      %p75 = scmp.eq.s32.totalorder %s23, 0
      %p76 = por %p74, %p75
      %s78 = sadd.s32 %s77, 1
      %p81 = scmp.eq.s32.totalorder %s17, 1
      %p82 = scmp.ne.s32.totalorder %s77, %s79
      %p83 = scmp.eq.s32.totalorder %s17, 0
      %p84 = por %p82, %p83
      %p85 = scmp.ne.s32.totalorder %s77, %s79
      %p86 = scmp.eq.s32.totalorder %s22, 1
      %p87 = por %p85, %p86
      %p88 = scmp.ne.s32.totalorder %s79, %s80
      %p89 = scmp.eq.s32.totalorder %s22, 0
      %p90 = por %p88, %p89
      %p91 = scmp.ne.s32.totalorder %s79, %s80
      %p92 = scmp.eq.s32.totalorder %s23, 1
      %p93 = por %p91, %p92
      %p95 = scmp.ne.s32.totalorder %s80, %s94
      %p96 = scmp.eq.s32.totalorder %s23, 0
      %p97 = por %p95, %p96
      %s99 = sadd.s32 %s98, 1
      %p102 = scmp.eq.s32.totalorder %s17, 1
      %p103 = scmp.ne.s32.totalorder %s98, %s100
      %p104 = scmp.eq.s32.totalorder %s17, 0
      %p105 = por %p103, %p104
      %p106 = scmp.ne.s32.totalorder %s98, %s100
      %p107 = scmp.eq.s32.totalorder %s22, 1
      %p108 = por %p106, %p107
      %p109 = scmp.ne.s32.totalorder %s100, %s101
      %p110 = scmp.eq.s32.totalorder %s22, 0
      %p111 = por %p109, %p110
      %p112 = scmp.ne.s32.totalorder %s100, %s101
      %p113 = scmp.eq.s32.totalorder %s23, 1
      %p114 = por %p112, %p113
      %p116 = scmp.ne.s32.totalorder %s101, %s115
      %p117 = scmp.eq.s32.totalorder %s23, 0
      %p118 = por %p116, %p117
      %s120 = sadd.s32 %s119, 1
      %p123 = scmp.eq.s32.totalorder %s17, 1
      %p124 = scmp.ne.s32.totalorder %s119, %s121
      %p125 = scmp.eq.s32.totalorder %s17, 0
      %p126 = por %p124, %p125
      %p127 = scmp.ne.s32.totalorder %s119, %s121
      %p128 = scmp.eq.s32.totalorder %s22, 1
      %p129 = por %p127, %p128
      %p130 = scmp.ne.s32.totalorder %s121, %s122
      %p131 = scmp.eq.s32.totalorder %s22, 0
      %p132 = por %p130, %p131
      %p133 = scmp.ne.s32.totalorder %s121, %s122
      %p134 = scmp.eq.s32.totalorder %s23, 1
      %p135 = por %p133, %p134
      %p137 = scmp.ne.s32.totalorder %s122, %s136
      %p138 = scmp.eq.s32.totalorder %s23, 0
      %p139 = por %p137, %p138
      %s141 = sadd.s32 %s140, 1
      %p144 = scmp.eq.s32.totalorder %s17, 1
      %p145 = scmp.ne.s32.totalorder %s140, %s142
      %p146 = scmp.eq.s32.totalorder %s17, 0
      %p147 = por %p145, %p146
      %p148 = scmp.ne.s32.totalorder %s140, %s142
      %p149 = scmp.eq.s32.totalorder %s22, 1
      %p150 = por %p148, %p149
      %p151 = scmp.ne.s32.totalorder %s142, %s143
      %p152 = scmp.eq.s32.totalorder %s22, 0
      %p153 = por %p151, %p152
      %p154 = scmp.ne.s32.totalorder %s142, %s143
      %p155 = scmp.eq.s32.totalorder %s23, 1
      %p156 = por %p154, %p155
      %p158 = scmp.ne.s32.totalorder %s143, %s157
      %p159 = scmp.eq.s32.totalorder %s23, 0
      %p160 = por %p158, %p159
      %s162 = sadd.s32 %s161, 1
      %p165 = scmp.eq.s32.totalorder %s17, 1
      %p166 = scmp.ne.s32.totalorder %s161, %s163
      %p167 = scmp.eq.s32.totalorder %s17, 0
      %p168 = por %p166, %p167
      %p169 = scmp.ne.s32.totalorder %s161, %s163
      %p170 = scmp.eq.s32.totalorder %s22, 1
      %p171 = por %p169, %p170
      %p172 = scmp.ne.s32.totalorder %s163, %s164
      %p173 = scmp.eq.s32.totalorder %s22, 0
      %p174 = por %p172, %p173
      %p175 = scmp.ne.s32.totalorder %s163, %s164
      %p176 = scmp.eq.s32.totalorder %s23, 1
      %p177 = por %p175, %p176
      %p179 = scmp.ne.s32.totalorder %s164, %s178
      %p180 = scmp.eq.s32.totalorder %s23, 0
      %p181 = por %p179, %p180
      %s183 = sadd.s32 %s182, 1
      %p186 = scmp.eq.s32.totalorder %s17, 1
      %p187 = scmp.ne.s32.totalorder %s182, %s184
      %p188 = scmp.eq.s32.totalorder %s17, 0
      %p189 = por %p187, %p188
      %p190 = scmp.ne.s32.totalorder %s182, %s184
      %p191 = scmp.eq.s32.totalorder %s22, 1
      %p192 = por %p190, %p191
      %p193 = scmp.ne.s32.totalorder %s184, %s185
      %p194 = scmp.eq.s32.totalorder %s22, 0
      %p195 = por %p193, %p194
      %p196 = scmp.ne.s32.totalorder %s184, %s185
      %p197 = scmp.eq.s32.totalorder %s23, 1
      %p198 = por %p196, %p197
      %p200 = scmp.ne.s32.totalorder %s185, %s199
      %p201 = scmp.eq.s32.totalorder %s23, 0
      %p202 = por %p200, %p201
      %s203 = ssub.s32 %s17, %s24
      %p204 = scmp.eq.s32.totalorder %s203, 0
      %s206 = sadd.s32 %s205, 1
      %s207 = scalar_select %p204, %s205, %s206
      %p210 = pneg %p204
      %p211 = scmp.eq.s32.totalorder %s17, 1
      %p212 = por %p210, %p211
      %p213 = scmp.ne.s32.totalorder %s205, %s208
      %p214 = scmp.eq.s32.totalorder %s17, 0
      %p215 = por %p213, %p214
      %p216 = scmp.ne.s32.totalorder %s205, %s208
      %p217 = scmp.eq.s32.totalorder %s22, 1
      %p218 = por %p216, %p217
      %p219 = scmp.ne.s32.totalorder %s208, %s209
      %p220 = scmp.eq.s32.totalorder %s22, 0
      %p221 = por %p219, %p220
      %p222 = scmp.ne.s32.totalorder %s208, %s209
      %p223 = scmp.eq.s32.totalorder %s23, 1
      %p224 = por %p222, %p223
      %p226 = scmp.ne.s32.totalorder %s209, %s225
      %p227 = scmp.eq.s32.totalorder %s23, 0
      %p228 = por %p226, %p227
      %p229 = scmp.le.s32.totalorder 1, %s17
      %p230 = scmp.lt.s32.totalorder %s17, 3
      %p231 = pnand %p229, %p230
      %p232 = pneg %p231
      // Predicated region
      $region9: #{tpu_custom_call.1} parent=5 // pred_check
        _
      $region10: #{tpu_custom_call.1} parent=5 // pred_check_branch
        %234 = sbr.rel (%p231) target = $region12
      $region11: #{tpu_custom_call.1} parent=5 // pred_region
        %s235 = ssub.s32 %s17, 1
        // Predicated region
        $region13: #{tpu_custom_call.1} parent=11 // pred_check
          %p236 = pneg %p90
        $region14: #{tpu_custom_call.1} parent=11 // pred_check_branch
          %238 = sbr.rel (%p236) target = $region16
        $region15: #{tpu_custom_call.1} parent=11 // pred_region
          _
        $region16: #{tpu_custom_call.1} parent=11 // pred_fallthru
          _
        // Predicated region
        $region17: #{tpu_custom_call.1} parent=11 // pred_check
          %p239 = pneg %p111
        $region18: #{tpu_custom_call.1} parent=11 // pred_check_branch
          %241 = sbr.rel (%p239) target = $region20
        $region19: #{tpu_custom_call.1} parent=11 // pred_region
          _
        $region20: #{tpu_custom_call.1} parent=11 // pred_fallthru
          _
        // Predicated region
        $region21: #{tpu_custom_call.1} parent=11 // pred_check
          %p242 = pneg %p132
        $region22: #{tpu_custom_call.1} parent=11 // pred_check_branch
          %244 = sbr.rel (%p242) target = $region24
        $region23: #{tpu_custom_call.1} parent=11 // pred_region
          _
        $region24: #{tpu_custom_call.1} parent=11 // pred_fallthru
          _
        // Predicated region
        $region25: #{tpu_custom_call.1} parent=11 // pred_check
          %p245 = pneg %p153
        $region26: #{tpu_custom_call.1} parent=11 // pred_check_branch
          %247 = sbr.rel (%p245) target = $region28
        $region27: #{tpu_custom_call.1} parent=11 // pred_region
          _
        $region28: #{tpu_custom_call.1} parent=11 // pred_fallthru
          _
        // Predicated region
        $region29: #{tpu_custom_call.1} parent=11 // pred_check
          %p248 = pneg %p174
        $region30: #{tpu_custom_call.1} parent=11 // pred_check_branch
          %250 = sbr.rel (%p248) target = $region32
        $region31: #{tpu_custom_call.1} parent=11 // pred_region
          _
        $region32: #{tpu_custom_call.1} parent=11 // pred_fallthru
          _
        // Predicated region
        $region33: #{tpu_custom_call.1} parent=11 // pred_check
          %p251 = pneg %p195
        $region34: #{tpu_custom_call.1} parent=11 // pred_check_branch
          %253 = sbr.rel (%p251) target = $region36
        $region35: #{tpu_custom_call.1} parent=11 // pred_region
          _
        $region36: #{tpu_custom_call.1} parent=11 // pred_fallthru
          _
      $region12: #{tpu_custom_call.1} parent=5 // pred_fallthru
        _
      %p254 = scmp.lt.s32.totalorder %s17, 2
      // Predicated region
      $region37: #{tpu_custom_call.1} parent=5 // pred_check
        %p255 = pneg %p254
      $region38: #{tpu_custom_call.1} parent=5 // pred_check_branch
        %257 = sbr.rel (%p255) target = $region40
      $region39: #{tpu_custom_call.1} parent=5 // pred_region
        // Predicated region
        $region41: #{tpu_custom_call.1} parent=39 // pred_check
          %p258 = pneg %p37
        $region42: #{tpu_custom_call.1} parent=39 // pred_check_branch
          %260 = sbr.rel (%p258) target = $region44
        $region43: #{tpu_custom_call.1} parent=39 // pred_region
          %p261 = scmp.lt.s32.totalorder %s17, 1
          %s262 = scalar_select %p261, %s17, 1
          %s263 = smul.addr %s262, 8
          %s264 = smul.addr %s263, 8
          %s265 = scalar_lea.vmem %s0, %s264
        $region44: #{tpu_custom_call.1} parent=39 // pred_fallthru
          _
        // Predicated region
        $region45: #{tpu_custom_call.1} parent=39 // pred_check
          %p266 = pneg %p63
        $region46: #{tpu_custom_call.1} parent=39 // pred_check_branch
          %268 = sbr.rel (%p266) target = $region48
        $region47: #{tpu_custom_call.1} parent=39 // pred_region
          %p269 = scmp.lt.s32.totalorder %s17, 1
          %s270 = scalar_select %p269, %s17, 1
          %s271 = scalar_lea.vmem %s1, %s270
        $region48: #{tpu_custom_call.1} parent=39 // pred_fallthru
          _
      $region40: #{tpu_custom_call.1} parent=5 // pred_fallthru
        _
      %p272 = scmp.le.s32.totalorder 1, %s17
      %p273 = scmp.lt.s32.totalorder %s17, 3
      %p274 = pnand %p272, %p273
      %p275 = pneg %p274
      // Predicated region
      $region49: #{tpu_custom_call.1} parent=5 // pred_check
        _
      $region50: #{tpu_custom_call.1} parent=5 // pred_check_branch
        %277 = sbr.rel (%p274) target = $region52
      $region51: #{tpu_custom_call.1} parent=5 // pred_region
        %s278 = ssub.s32 %s17, 1
        %p279 = scmp.lt.s32.totalorder %s22, 1
        %s280 = scalar_select %p279, %s22, 1
        %s281 = smul.addr %s280, 8
        %s282 = smul.addr %s281, 8
        %s283 = scalar_lea.vmem %s0, %s282
        %p284 = pneg %p43
        %p285 = pneg %p40
        %p286 = scmp.lt.s32.totalorder %s22, 1
        %s287 = scalar_select %p286, %s22, 1
        %s288 = scalar_lea.vmem %s1, %s287
        %p289 = pneg %p69
        %p290 = pneg %p66
        %p291 = pneg %p90
        %p292 = pneg %p87
        %p293 = pneg %p111
        %p294 = pneg %p108
        %p295 = pneg %p132
        %p296 = pneg %p129
        %p297 = pneg %p153
        %p298 = pneg %p150
        %p299 = pneg %p174
        %p300 = pneg %p171
        %p301 = pneg %p195
        %p302 = pneg %p192
        %p303 = pneg %p221
        %p304 = pneg %p218
        %s305 = sand.u32 %s208, 1
        %s306 = scalar_lea.sflag [#allocation3], %s305
        %s307 = sand.u32 %s208, 1
        %s308 = smul.addr %s307, 64
        %s309 = scalar_lea.vmem [#allocation2], %s308
        %p310 = scmp.lt.s32.totalorder %s22, 1
        %s311 = scalar_select %p310, %s22, 1
        %s312 = smul.addr %s311, 8
        %s313 = smul.addr %s312, 8
        %s314 = scalar_lea.vmem %s0, %s313
        %p315 = scmp.lt.s32.totalorder %s22, 1
        %s316 = scalar_select %p315, %s22, 1
        %s317 = scalar_lea.vmem %s1, %s316
        %v318 = vld [vmem:[%s314] sm:$0xff]
        %v319 = vld [vmem:[%s314 + $0x8] sm:$0xff]
        %v320 = vld [vmem:[%s314 + $0x10] sm:$0xff]
        %v321 = vld [vmem:[%s314 + $0x18] sm:$0xff]
        %v322 = vld [vmem:[%s314 + $0x20] sm:$0xff]
        %v323 = vld [vmem:[%s314 + $0x28] sm:$0xff]
        %v324 = vld [vmem:[%s314 + $0x30] sm:$0xff]
        %v325 = vld [vmem:[%s314 + $0x38] sm:$0xff]
        %v326 = vld [vmem:[%s2] sm:$0xff]
        %v327 = vld [vmem:[%s2 + $0x8] sm:$0xff]
        %v328 = vld [vmem:[%s2 + $0x10] sm:$0xff]
        %v329 = vld [vmem:[%s2 + $0x18] sm:$0xff]
        %vm330 = vcmask 261120
        %v332 = vsel %vm330, %v318, 0
        %v335 = vsel %vm330, %v319, 0
        %v338 = vsel %vm330, %v320, 0
        %v341 = vsel %vm330, %v321, 0
        %v344 = vsel %vm330, %v322, 0
        %v347 = vsel %vm330, %v323, 0
        %v350 = vsel %vm330, %v324, 0
        %v353 = vsel %vm330, %v325, 0
        %355 = vmatprep.subr.mxu0 0.0
        %356 = vmatpush1.msra.mxu0 0.0
        %357 = vmatprep.subr.mxu0 0.0
        %358 = vmatpush1.msra.mxu0 0.0
        %359 = vmatprep.subr.mxu0 0.0
        %360 = vmatpush1.msra.mxu0 0.0
        %361 = vmatprep.subr.mxu0 0.0
        %362 = vmatpush1.msra.mxu0 0.0
        %363 = vmatprep.subr.mxu0 0.0
        %364 = vmatpush1.msra.mxu0 0.0
        %365 = vmatprep.subr.mxu0 0.0
        %366 = vmatpush1.msra.mxu0 0.0
        %367 = vmatprep.subr.mxu0 0.0
        %368 = vmatpush1.msra.mxu0 0.0
        %369 = vmatprep.subr.mxu0 0.0
        %370 = vmatpush1.msra.mxu0 0.0
        %371 = vmatprep.subr.mxu0 0.0
        %372 = vmatpush1.msra.mxu0 0.0
        %373 = vmatprep.subr.mxu0 0.0
        %374 = vmatpush1.msra.mxu0 0.0
        %375 = vmatprep.subr.mxu0 0.0
        %376 = vmatpush1.msra.mxu0 0.0
        %377 = vmatprep.subr.mxu0 0.0
        %378 = vmatpush1.msra.mxu0 0.0
        %379 = vmatprep.subr.mxu0 0.0
        %380 = vmatpush1.msra.mxu0 %v329
        %381 = vmatprep.subr.mxu0 0.0
        %382 = vmatpush1.msra.mxu0 %v328
        %383 = vmatprep.subr.mxu0 0.0
        %384 = vmatpush1.msra.mxu0 %v327
        %385 = vmatprep.subr.mxu0 0.0
        %386 = vmatpush1.msra.mxu0 %v326
        %387 = vmatprep.subr.mxu0 0.0
        %388 = vmatpush2.msra.mxu0 0.0
        %389 = vmatprep.subr.mxu0 0.0
        %390 = vmatpush2.msra.mxu0 0.0
        %391 = vmatprep.subr.mxu0 0.0
        %392 = vmatpush2.msra.mxu0 0.0
        %393 = vmatprep.subr.mxu0 0.0
        %394 = vmatpush2.msra.mxu0 0.0
        %395 = vmatprep.subr.mxu0 0.0
        %396 = vmatpush2.msra.mxu0 0.0
        %397 = vmatprep.subr.mxu0 0.0
        %398 = vmatpush2.msra.mxu0 0.0
        %399 = vmatprep.subr.mxu0 0.0
        %400 = vmatpush2.msra.mxu0 0.0
        %401 = vmatprep.subr.mxu0 0.0
        %402 = vmatpush2.msra.mxu0 0.0
        %403 = vmatprep.subr.mxu0 0.0
        %404 = vmatpush2.msra.mxu0 0.0
        %405 = vmatprep.subr.mxu0 0.0
        %406 = vmatpush2.msra.mxu0 0.0
        %407 = vmatprep.subr.mxu0 0.0
        %408 = vmatpush2.msra.mxu0 0.0
        %409 = vmatprep.subr.mxu0 0.0
        %410 = vmatpush2.msra.mxu0 0.0
        %411 = vmatprep.subr.mxu0 0.0
        %412 = vmatpush2.msra.mxu0 0.0
        %413 = vmatprep.subr.mxu0 0.0
        %414 = vmatpush2.msra.mxu0 0.0
        %415 = vmatprep.subr.mxu0 0.0
        %416 = vmatpush2.msra.mxu0 0.0
        %417 = vmatprep.subr.mxu0 0.0
        %418 = vmatpush2.msra.mxu0 0.0
        %419 = vmatprep.mubr.f32.mxu0 0.0
        %420 = vmatmul.mubr.f32.gmra.mxu0 %v332
        %v421 = vpop.f32.mrf.mxu0
        %v422 = vadd.f32 0.0, %v421
        %v423 = vpop.f32.mrf.mxu0
        %424 = vmatprep.mubr.f32.mxu0 0.0
        %425 = vmatmul.mubr.f32.gmra.mxu0 %v335
        %v426 = vpop.f32.mrf.mxu0
        %v427 = vadd.f32 0.0, %v426
        %v428 = vpop.f32.mrf.mxu0
        %429 = vmatprep.mubr.f32.mxu0 0.0
        %430 = vmatmul.mubr.f32.gmra.mxu0 %v338
        %v431 = vpop.f32.mrf.mxu0
        %v432 = vadd.f32 0.0, %v431
        %v433 = vpop.f32.mrf.mxu0
        %434 = vmatprep.mubr.f32.mxu0 0.0
        %435 = vmatmul.mubr.f32.gmra.mxu0 %v341
        %v436 = vpop.f32.mrf.mxu0
        %v437 = vadd.f32 0.0, %v436
        %v438 = vpop.f32.mrf.mxu0
        %439 = vmatprep.mubr.f32.mxu0 0.0
        %440 = vmatmul.mubr.f32.gmra.mxu0 %v344
        %v441 = vpop.f32.mrf.mxu0
        %v442 = vadd.f32 0.0, %v441
        %v443 = vpop.f32.mrf.mxu0
        %444 = vmatprep.mubr.f32.mxu0 0.0
        %445 = vmatmul.mubr.f32.gmra.mxu0 %v347
        %v446 = vpop.f32.mrf.mxu0
        %v447 = vadd.f32 0.0, %v446
        %v448 = vpop.f32.mrf.mxu0
        %449 = vmatprep.mubr.f32.mxu0 0.0
        %450 = vmatmul.mubr.f32.gmra.mxu0 %v350
        %v451 = vpop.f32.mrf.mxu0
        %v452 = vadd.f32 0.0, %v451
        %v453 = vpop.f32.mrf.mxu0
        %454 = vmatprep.mubr.f32.mxu0 0.0
        %455 = vmatmul.mubr.f32.gmra.mxu0 %v353
        %v456 = vpop.f32.mrf.mxu0
        %v457 = vadd.f32 0.0, %v456
        %v458 = vpop.f32.mrf.mxu0
        %459 = vdwg.mxu0
        %v460 = vmax.f32 %v422, 0.0
        %v461 = vmax.f32 %v427, 0.0
        %v462 = vmax.f32 %v432, 0.0
        %v463 = vmax.f32 %v437, 0.0
        %v464 = vmax.f32 %v442, 0.0
        %v465 = vmax.f32 %v447, 0.0
        %v466 = vmax.f32 %v452, 0.0
        %v467 = vmax.f32 %v457, 0.0
        %v468 = vlaneseq
        %v469 = vshrl.u32 %v468, 7
        %v470 = vadd.s32 %v469, 8
        %v471 = vadd.s32 %v469, 16
        %v472 = vadd.s32 %v469, 24
        %v473 = vadd.s32 %v469, 32
        %v474 = vadd.s32 %v469, 40
        %v475 = vadd.s32 %v469, 48
        %v476 = vadd.s32 %v469, 56
        %vm477 = vcmp.lt.s32.totalorder %v469, 0
        %v478 = vsub.s32 0, %v469
        %v479 = vsel %vm477, %v478, %v469
        %v480 = vshrl.u32 %v479, 3
        %v481 = vand.u32 %v479, 7
        %v482 = vsub.s32 0, %v481
        %v483 = vsel %vm477, %v482, %v481
        %vm484 = vcmp.lt.s32.totalorder %v470, 0
        %v485 = vsub.s32 0, %v470
        %v486 = vsel %vm484, %v485, %v470
        %v487 = vshrl.u32 %v486, 3
        %v488 = vand.u32 %v486, 7
        %v489 = vsub.s32 0, %v488
        %v490 = vsel %vm484, %v489, %v488
        %vm491 = vcmp.lt.s32.totalorder %v471, 0
        %v492 = vsub.s32 0, %v471
        %v493 = vsel %vm491, %v492, %v471
        %v494 = vshrl.u32 %v493, 3
        %v495 = vand.u32 %v493, 7
        %v496 = vsub.s32 0, %v495
        %v497 = vsel %vm491, %v496, %v495
        %vm498 = vcmp.lt.s32.totalorder %v472, 0
        %v499 = vsub.s32 0, %v472
        %v500 = vsel %vm498, %v499, %v472
        %v501 = vshrl.u32 %v500, 3
        %v502 = vand.u32 %v500, 7
        %v503 = vsub.s32 0, %v502
        %v504 = vsel %vm498, %v503, %v502
        %vm505 = vcmp.lt.s32.totalorder %v473, 0
        %v506 = vsub.s32 0, %v473
        %v507 = vsel %vm505, %v506, %v473
        %v508 = vshrl.u32 %v507, 3
        %v509 = vand.u32 %v507, 7
        %v510 = vsub.s32 0, %v509
        %v511 = vsel %vm505, %v510, %v509
        %vm512 = vcmp.lt.s32.totalorder %v474, 0
        %v513 = vsub.s32 0, %v474
        %v514 = vsel %vm512, %v513, %v474
        %v515 = vshrl.u32 %v514, 3
        %v516 = vand.u32 %v514, 7
        %v517 = vsub.s32 0, %v516
        %v518 = vsel %vm512, %v517, %v516
        %vm519 = vcmp.lt.s32.totalorder %v475, 0
        %v520 = vsub.s32 0, %v475
        %v521 = vsel %vm519, %v520, %v475
        %v522 = vshrl.u32 %v521, 3
        %v523 = vand.u32 %v521, 7
        %v524 = vsub.s32 0, %v523
        %v525 = vsel %vm519, %v524, %v523
        %vm526 = vcmp.lt.s32.totalorder %v476, 0
        %v527 = vsub.s32 0, %v476
        %v528 = vsel %vm526, %v527, %v476
        %v529 = vshrl.u32 %v528, 3
        %v530 = vand.u32 %v528, 7
        %v531 = vsub.s32 0, %v530
        %v532 = vsel %vm526, %v531, %v530
        %vm533 = vcmp.ne.s32.totalorder %v483, 0
        %vm534 = vcmp.ne.s32.totalorder %v490, 0
        %vm535 = vcmp.ne.s32.totalorder %v497, 0
        %vm536 = vcmp.ne.s32.totalorder %v504, 0
        %vm537 = vcmp.ne.s32.totalorder %v511, 0
        %vm538 = vcmp.ne.s32.totalorder %v518, 0
        %vm539 = vcmp.ne.s32.totalorder %v525, 0
        %vm540 = vcmp.ne.s32.totalorder %v532, 0
        %vm541 = vcmp.lt.s32.totalorder %v483, 0
        %vm542 = vcmp.lt.s32.totalorder %v490, 0
        %vm543 = vcmp.lt.s32.totalorder %v497, 0
        %vm544 = vcmp.lt.s32.totalorder %v504, 0
        %vm545 = vcmp.lt.s32.totalorder %v511, 0
        %vm546 = vcmp.lt.s32.totalorder %v518, 0
        %vm547 = vcmp.lt.s32.totalorder %v525, 0
        %vm548 = vcmp.lt.s32.totalorder %v532, 0
        %vm549 = vmand %vm541, %vm533
        %vm550 = vmand %vm542, %vm534
        %vm551 = vmand %vm543, %vm535
        %vm552 = vmand %vm544, %vm536
        %vm553 = vmand %vm545, %vm537
        %vm554 = vmand %vm546, %vm538
        %vm555 = vmand %vm547, %vm539
        %vm556 = vmand %vm548, %vm540
        %v557 = vadd.s32 %v483, 8
        %v558 = vadd.s32 %v490, 8
        %v559 = vadd.s32 %v497, 8
        %v560 = vadd.s32 %v504, 8
        %v561 = vadd.s32 %v511, 8
        %v562 = vadd.s32 %v518, 8
        %v563 = vadd.s32 %v525, 8
        %v564 = vadd.s32 %v532, 8
        %v565 = vsel %vm549, %v557, %v483
        %v566 = vsel %vm550, %v558, %v490
        %v567 = vsel %vm551, %v559, %v497
        %v568 = vsel %vm552, %v560, %v504
        %v569 = vsel %vm553, %v561, %v511
        %v570 = vsel %vm554, %v562, %v518
        %v571 = vsel %vm555, %v563, %v525
        %v572 = vsel %vm556, %v564, %v532
        %vm573 = vcmp.eq.s32.totalorder %v565, 0
        %vm574 = vcmp.eq.s32.totalorder %v566, 0
        %vm575 = vcmp.eq.s32.totalorder %v567, 0
        %vm576 = vcmp.eq.s32.totalorder %v568, 0
        %vm577 = vcmp.eq.s32.totalorder %v569, 0
        %vm578 = vcmp.eq.s32.totalorder %v570, 0
        %vm579 = vcmp.eq.s32.totalorder %v571, 0
        %vm580 = vcmp.eq.s32.totalorder %v572, 0
        %589 = vrot.lane.b32.xlu0 %v460, 64
        %v590 = vpop.permute.xlu0 %589
        %591 = vrot.lane.b32.xlu0 %v461, 64
        %v592 = vpop.permute.xlu0 %591
        %593 = vrot.lane.b32.xlu0 %v462, 64
        %v594 = vpop.permute.xlu0 %593
        %595 = vrot.lane.b32.xlu0 %v463, 64
        %v596 = vpop.permute.xlu0 %595
        %597 = vrot.lane.b32.xlu0 %v464, 64
        %v598 = vpop.permute.xlu0 %597
        %599 = vrot.lane.b32.xlu0 %v465, 64
        %v600 = vpop.permute.xlu0 %599
        %601 = vrot.lane.b32.xlu0 %v466, 64
        %v602 = vpop.permute.xlu0 %601
        %603 = vrot.lane.b32.xlu0 %v467, 64
        %v604 = vpop.permute.xlu0 %603
        %v613 = vrot.slane %v590, 7
        %v614 = vrot.slane %v592, 7
        %v615 = vrot.slane %v594, 7
        %v616 = vrot.slane %v596, 7
        %v617 = vrot.slane %v598, 7
        %v618 = vrot.slane %v600, 7
        %v619 = vrot.slane %v602, 7
        %v620 = vrot.slane %v604, 7
        %vm621 = vcmp.lt.s32.totalorder %v469, 1
        %v622 = vsel %vm621, %v619, %v620
        %v623 = vsel %vm621, %v618, %v619
        %v624 = vsel %vm621, %v617, %v618
        %v625 = vsel %vm621, %v616, %v617
        %v626 = vsel %vm621, %v615, %v616
        %v627 = vsel %vm621, %v614, %v615
        %v628 = vsel %vm621, %v613, %v614
        %v629 = vsel %vm621, %v620, %v613
        %v630 = vsel %vm573, 1, 0
        %v631 = vsel %vm574, 1, 0
        %v632 = vsel %vm575, 1, 0
        %v633 = vsel %vm576, 1, 0
        %v634 = vsel %vm577, 1, 0
        %v635 = vsel %vm578, 1, 0
        %v636 = vsel %vm579, 1, 0
        %v637 = vsel %vm580, 1, 0
        %vm638 = vcmp.eq.s32.totalorder %v630, 1
        %vm639 = vcmp.eq.s32.totalorder %v631, 1
        %vm640 = vcmp.eq.s32.totalorder %v632, 1
        %vm641 = vcmp.eq.s32.totalorder %v633, 1
        %vm642 = vcmp.eq.s32.totalorder %v634, 1
        %vm643 = vcmp.eq.s32.totalorder %v635, 1
        %vm644 = vcmp.eq.s32.totalorder %v636, 1
        %vm645 = vcmp.eq.s32.totalorder %v637, 1
        %v646 = vsel %vm638, 0.0, %v629
        %v647 = vsel %vm639, 0.0, %v628
        %v648 = vsel %vm640, 0.0, %v627
        %v649 = vsel %vm641, 0.0, %v626
        %v650 = vsel %vm642, 0.0, %v625
        %v651 = vsel %vm643, 0.0, %v624
        %v652 = vsel %vm644, 0.0, %v623
        %v653 = vsel %vm645, 0.0, %v622
        %vm654 = vcmp.eq.s32.totalorder %v565, 7
        %vm655 = vcmp.eq.s32.totalorder %v566, 7
        %vm656 = vcmp.eq.s32.totalorder %v567, 7
        %vm657 = vcmp.eq.s32.totalorder %v568, 7
        %vm658 = vcmp.eq.s32.totalorder %v569, 7
        %vm659 = vcmp.eq.s32.totalorder %v570, 7
        %vm660 = vcmp.eq.s32.totalorder %v571, 7
        %vm661 = vcmp.eq.s32.totalorder %v572, 7
        %v662 = vrot.slane %v590, 1
        %v663 = vrot.slane %v592, 1
        %v664 = vrot.slane %v594, 1
        %v665 = vrot.slane %v596, 1
        %v666 = vrot.slane %v598, 1
        %v667 = vrot.slane %v600, 1
        %v668 = vrot.slane %v602, 1
        %v669 = vrot.slane %v604, 1
        %vm670 = vcmp.lt.s32.totalorder %v469, 7
        %v671 = vsel %vm670, %v668, %v669
        %v672 = vsel %vm670, %v667, %v668
        %v673 = vsel %vm670, %v666, %v667
        %v674 = vsel %vm670, %v665, %v666
        %v675 = vsel %vm670, %v664, %v665
        %v676 = vsel %vm670, %v663, %v664
        %v677 = vsel %vm670, %v662, %v663
        %v678 = vsel %vm670, %v669, %v662
        %v679 = vsel %vm654, 1, 0
        %v680 = vsel %vm655, 1, 0
        %v681 = vsel %vm656, 1, 0
        %v682 = vsel %vm657, 1, 0
        %v683 = vsel %vm658, 1, 0
        %v684 = vsel %vm659, 1, 0
        %v685 = vsel %vm660, 1, 0
        %v686 = vsel %vm661, 1, 0
        %vm687 = vcmp.eq.s32.totalorder %v679, 1
        %vm688 = vcmp.eq.s32.totalorder %v680, 1
        %vm689 = vcmp.eq.s32.totalorder %v681, 1
        %vm690 = vcmp.eq.s32.totalorder %v682, 1
        %vm691 = vcmp.eq.s32.totalorder %v683, 1
        %vm692 = vcmp.eq.s32.totalorder %v684, 1
        %vm693 = vcmp.eq.s32.totalorder %v685, 1
        %vm694 = vcmp.eq.s32.totalorder %v686, 1
        %v695 = vsel %vm687, 0.0, %v677
        %v696 = vsel %vm688, 0.0, %v676
        %v697 = vsel %vm689, 0.0, %v675
        %v698 = vsel %vm690, 0.0, %v674
        %v699 = vsel %vm691, 0.0, %v673
        %v700 = vsel %vm692, 0.0, %v672
        %v701 = vsel %vm693, 0.0, %v671
        %v702 = vsel %vm694, 0.0, %v678
        %703 = vrot.lane.b32.xlu0 %v460, 80
        %v704 = vpop.permute.xlu0 %703
        %705 = vrot.lane.b32.xlu0 %v461, 80
        %v706 = vpop.permute.xlu0 %705
        %707 = vrot.lane.b32.xlu0 %v462, 80
        %v708 = vpop.permute.xlu0 %707
        %709 = vrot.lane.b32.xlu0 %v463, 80
        %v710 = vpop.permute.xlu0 %709
        %711 = vrot.lane.b32.xlu0 %v464, 80
        %v712 = vpop.permute.xlu0 %711
        %713 = vrot.lane.b32.xlu0 %v465, 80
        %v714 = vpop.permute.xlu0 %713
        %715 = vrot.lane.b32.xlu0 %v466, 80
        %v716 = vpop.permute.xlu0 %715
        %717 = vrot.lane.b32.xlu0 %v467, 80
        %v718 = vpop.permute.xlu0 %717
        %735 = vrot.lane.b32.xlu0 %v695, 32
        %v736 = vpop.permute.xlu0 %735
        %737 = vrot.lane.b32.xlu0 %v696, 32
        %v738 = vpop.permute.xlu0 %737
        %739 = vrot.lane.b32.xlu0 %v697, 32
        %v740 = vpop.permute.xlu0 %739
        %741 = vrot.lane.b32.xlu0 %v698, 32
        %v742 = vpop.permute.xlu0 %741
        %743 = vrot.lane.b32.xlu0 %v699, 32
        %v744 = vpop.permute.xlu0 %743
        %745 = vrot.lane.b32.xlu0 %v700, 32
        %v746 = vpop.permute.xlu0 %745
        %747 = vrot.lane.b32.xlu0 %v701, 32
        %v748 = vpop.permute.xlu0 %747
        %749 = vrot.lane.b32.xlu0 %v702, 32
        %v750 = vpop.permute.xlu0 %749
        %vm759 = vcmask 130048
        %v760 = vsel %vm759, %v646, %v704
        %v761 = vsel %vm759, %v647, %v706
        %v762 = vsel %vm759, %v648, %v708
        %v763 = vsel %vm759, %v649, %v710
        %v764 = vsel %vm759, %v650, %v712
        %v765 = vsel %vm759, %v651, %v714
        %v766 = vsel %vm759, %v652, %v716
        %v767 = vsel %vm759, %v653, %v718
        %v768 = vsel %vm330, %v760, %v736
        %v769 = vsel %vm330, %v761, %v738
        %v770 = vsel %vm330, %v762, %v740
        %v771 = vsel %vm330, %v763, %v742
        %v772 = vsel %vm330, %v764, %v744
        %v773 = vsel %vm330, %v765, %v746
        %v774 = vsel %vm330, %v766, %v748
        %v775 = vsel %vm330, %v767, %v750
        %vm776 = vcmp.lt.s32.totalorder %v469, 8
        %vm777 = vcmp.lt.s32.totalorder %v470, 8
        %vm778 = vcmp.lt.s32.totalorder %v471, 8
        %vm779 = vcmp.lt.s32.totalorder %v472, 8
        %vm780 = vcmp.lt.s32.totalorder %v473, 8
        %vm781 = vcmp.lt.s32.totalorder %v474, 8
        %vm782 = vcmp.lt.s32.totalorder %v475, 8
        %vm783 = vcmp.lt.s32.totalorder %v476, 8
        %v784 = vsel %vm776, 1, 0
        %v785 = vsel %vm777, 1, 0
        %v786 = vsel %vm778, 1, 0
        %v787 = vsel %vm779, 1, 0
        %v788 = vsel %vm780, 1, 0
        %v789 = vsel %vm781, 1, 0
        %v790 = vsel %vm782, 1, 0
        %v791 = vsel %vm783, 1, 0
        %vm792 = vcmp.eq.s32.totalorder %v784, 1
        %vm793 = vcmp.eq.s32.totalorder %v785, 1
        %vm794 = vcmp.eq.s32.totalorder %v786, 1
        %vm795 = vcmp.eq.s32.totalorder %v787, 1
        %vm796 = vcmp.eq.s32.totalorder %v788, 1
        %vm797 = vcmp.eq.s32.totalorder %v789, 1
        %vm798 = vcmp.eq.s32.totalorder %v790, 1
        %vm799 = vcmp.eq.s32.totalorder %v791, 1
        %v800 = vsel %vm792, 0.0, %v775
        %v801 = vsel %vm793, 0.0, %v768
        %v802 = vsel %vm794, 0.0, %v769
        %v803 = vsel %vm795, 0.0, %v770
        %v804 = vsel %vm796, 0.0, %v771
        %v805 = vsel %vm797, 0.0, %v772
        %v806 = vsel %vm798, 0.0, %v773
        %v807 = vsel %vm799, 0.0, %v774
        %vm808 = vcmp.ge.s32.totalorder %v469, 56
        %vm809 = vcmp.ge.s32.totalorder %v470, 56
        %vm810 = vcmp.ge.s32.totalorder %v471, 56
        %vm811 = vcmp.ge.s32.totalorder %v472, 56
        %vm812 = vcmp.ge.s32.totalorder %v473, 56
        %vm813 = vcmp.ge.s32.totalorder %v474, 56
        %vm814 = vcmp.ge.s32.totalorder %v475, 56
        %vm815 = vcmp.ge.s32.totalorder %v476, 56
        %v816 = vsel %vm808, 1, 0
        %v817 = vsel %vm809, 1, 0
        %v818 = vsel %vm810, 1, 0
        %v819 = vsel %vm811, 1, 0
        %v820 = vsel %vm812, 1, 0
        %v821 = vsel %vm813, 1, 0
        %v822 = vsel %vm814, 1, 0
        %v823 = vsel %vm815, 1, 0
        %vm824 = vcmp.eq.s32.totalorder %v816, 1
        %vm825 = vcmp.eq.s32.totalorder %v817, 1
        %vm826 = vcmp.eq.s32.totalorder %v818, 1
        %vm827 = vcmp.eq.s32.totalorder %v819, 1
        %vm828 = vcmp.eq.s32.totalorder %v820, 1
        %vm829 = vcmp.eq.s32.totalorder %v821, 1
        %vm830 = vcmp.eq.s32.totalorder %v822, 1
        %vm831 = vcmp.eq.s32.totalorder %v823, 1
        %v832 = vsel %vm824, 0.0, %v769
        %v833 = vsel %vm825, 0.0, %v770
        %v834 = vsel %vm826, 0.0, %v771
        %v835 = vsel %vm827, 0.0, %v772
        %v836 = vsel %vm828, 0.0, %v773
        %v837 = vsel %vm829, 0.0, %v774
        %v838 = vsel %vm830, 0.0, %v775
        %v839 = vsel %vm831, 0.0, %v768
        %v840 = vld [vmem:[%s3] sm:$0xff]
        %v841 = vld [vmem:[%s3 + $0x8] sm:$0xff]
        %v842 = vld [vmem:[%s3 + $0x10] sm:$0xff]
        %v843 = vld [vmem:[%s3 + $0x18] sm:$0xff]
        %v844 = vld [vmem:[%s3 + $0x20] sm:$0xff]
        %v845 = vld [vmem:[%s3 + $0x28] sm:$0xff]
        %s846 = scalar_lea.vmem %s3, 48
        %v847 = vld [vmem:[%s846] sm:$0xff]
        %v848 = vld [vmem:[%s846 + $0x8] sm:$0xff]
        %v849 = vld [vmem:[%s846 + $0x10] sm:$0xff]
        %v850 = vld [vmem:[%s846 + $0x18] sm:$0xff]
        %v851 = vld [vmem:[%s846 + $0x20] sm:$0xff]
        %v852 = vld [vmem:[%s846 + $0x28] sm:$0xff]
        %vm853 = vcmask 392192
        %v855 = vsel %vm853, %v768, 0
        %v858 = vsel %vm853, %v769, 0
        %v861 = vsel %vm853, %v770, 0
        %v864 = vsel %vm853, %v771, 0
        %v867 = vsel %vm853, %v772, 0
        %v870 = vsel %vm853, %v773, 0
        %v873 = vsel %vm853, %v774, 0
        %v876 = vsel %vm853, %v775, 0
        %878 = vmatprep.subr.mxu0 0.0
        %879 = vmatpush1.msra.mxu0 0.0
        %880 = vmatprep.subr.mxu0 0.0
        %881 = vmatpush1.msra.mxu0 0.0
        %882 = vmatprep.subr.mxu0 0.0
        %883 = vmatpush1.msra.mxu0 0.0
        %884 = vmatprep.subr.mxu0 0.0
        %885 = vmatpush1.msra.mxu0 0.0
        %886 = vmatprep.subr.mxu0 0.0
        %887 = vmatpush1.msra.mxu0 0.0
        %888 = vmatprep.subr.mxu0 0.0
        %889 = vmatpush1.msra.mxu0 0.0
        %890 = vmatprep.subr.mxu0 0.0
        %891 = vmatpush1.msra.mxu0 0.0
        %892 = vmatprep.subr.mxu0 0.0
        %893 = vmatpush1.msra.mxu0 0.0
        %894 = vmatprep.subr.mxu0 0.0
        %895 = vmatpush1.msra.mxu0 0.0
        %896 = vmatprep.subr.mxu0 0.0
        %897 = vmatpush1.msra.mxu0 0.0
        %898 = vmatprep.subr.mxu0 0.0
        %899 = vmatpush1.msra.mxu0 %v852
        %900 = vmatprep.subr.mxu0 0.0
        %901 = vmatpush1.msra.mxu0 %v851
        %902 = vmatprep.subr.mxu0 0.0
        %903 = vmatpush1.msra.mxu0 %v850
        %904 = vmatprep.subr.mxu0 0.0
        %905 = vmatpush1.msra.mxu0 %v849
        %906 = vmatprep.subr.mxu0 0.0
        %907 = vmatpush1.msra.mxu0 %v848
        %908 = vmatprep.subr.mxu0 0.0
        %909 = vmatpush1.msra.mxu0 %v847
        %910 = vmatprep.subr.mxu0 0.0
        %911 = vmatpush2.msra.mxu0 0.0
        %912 = vmatprep.subr.mxu0 0.0
        %913 = vmatpush2.msra.mxu0 0.0
        %914 = vmatprep.subr.mxu0 0.0
        %915 = vmatpush2.msra.mxu0 0.0
        %916 = vmatprep.subr.mxu0 0.0
        %917 = vmatpush2.msra.mxu0 0.0
        %918 = vmatprep.subr.mxu0 0.0
        %919 = vmatpush2.msra.mxu0 0.0
        %920 = vmatprep.subr.mxu0 0.0
        %921 = vmatpush2.msra.mxu0 0.0
        %922 = vmatprep.subr.mxu0 0.0
        %923 = vmatpush2.msra.mxu0 0.0
        %924 = vmatprep.subr.mxu0 0.0
        %925 = vmatpush2.msra.mxu0 0.0
        %926 = vmatprep.subr.mxu0 0.0
        %927 = vmatpush2.msra.mxu0 0.0
        %928 = vmatprep.subr.mxu0 0.0
        %929 = vmatpush2.msra.mxu0 0.0
        %930 = vmatprep.subr.mxu0 0.0
        %931 = vmatpush2.msra.mxu0 0.0
        %932 = vmatprep.subr.mxu0 0.0
        %933 = vmatpush2.msra.mxu0 0.0
        %934 = vmatprep.subr.mxu0 0.0
        %935 = vmatpush2.msra.mxu0 0.0
        %936 = vmatprep.subr.mxu0 0.0
        %937 = vmatpush2.msra.mxu0 0.0
        %938 = vmatprep.subr.mxu0 0.0
        %939 = vmatpush2.msra.mxu0 0.0
        %940 = vmatprep.subr.mxu0 0.0
        %941 = vmatpush2.msra.mxu0 0.0
        %942 = vmatprep.mubr.f32.mxu0 0.0
        %943 = vmatmul.mubr.f32.gmra.mxu0 %v855
        %v944 = vpop.f32.mrf.mxu0
        %v945 = vadd.f32 0.0, %v944
        %v946 = vpop.f32.mrf.mxu0
        %947 = vmatprep.mubr.f32.mxu0 0.0
        %948 = vmatmul.mubr.f32.gmra.mxu0 %v858
        %v949 = vpop.f32.mrf.mxu0
        %v950 = vadd.f32 0.0, %v949
        %v951 = vpop.f32.mrf.mxu0
        %952 = vmatprep.mubr.f32.mxu0 0.0
        %953 = vmatmul.mubr.f32.gmra.mxu0 %v861
        %v954 = vpop.f32.mrf.mxu0
        %v955 = vadd.f32 0.0, %v954
        %v956 = vpop.f32.mrf.mxu0
        %957 = vmatprep.mubr.f32.mxu0 0.0
        %958 = vmatmul.mubr.f32.gmra.mxu0 %v864
        %v959 = vpop.f32.mrf.mxu0
        %v960 = vadd.f32 0.0, %v959
        %v961 = vpop.f32.mrf.mxu0
        %962 = vmatprep.mubr.f32.mxu0 0.0
        %963 = vmatmul.mubr.f32.gmra.mxu0 %v867
        %v964 = vpop.f32.mrf.mxu0
        %v965 = vadd.f32 0.0, %v964
        %v966 = vpop.f32.mrf.mxu0
        %967 = vmatprep.mubr.f32.mxu0 0.0
        %968 = vmatmul.mubr.f32.gmra.mxu0 %v870
        %v969 = vpop.f32.mrf.mxu0
        %v970 = vadd.f32 0.0, %v969
        %v971 = vpop.f32.mrf.mxu0
        %972 = vmatprep.mubr.f32.mxu0 0.0
        %973 = vmatmul.mubr.f32.gmra.mxu0 %v873
        %v974 = vpop.f32.mrf.mxu0
        %v975 = vadd.f32 0.0, %v974
        %v976 = vpop.f32.mrf.mxu0
        %977 = vmatprep.mubr.f32.mxu0 0.0
        %978 = vmatmul.mubr.f32.gmra.mxu0 %v876
        %v979 = vpop.f32.mrf.mxu0
        %v980 = vadd.f32 0.0, %v979
        %v981 = vpop.f32.mrf.mxu0
        %982 = vdwg.mxu0
        %v984 = vsel %vm853, %v800, 0
        %v987 = vsel %vm853, %v801, 0
        %v990 = vsel %vm853, %v802, 0
        %v993 = vsel %vm853, %v803, 0
        %v996 = vsel %vm853, %v804, 0
        %v999 = vsel %vm853, %v805, 0
        %v1002 = vsel %vm853, %v806, 0
        %v1005 = vsel %vm853, %v807, 0
        %1007 = vmatprep.subr.mxu0 0.0
        %1008 = vmatpush1.msra.mxu0 0.0
        %1009 = vmatprep.subr.mxu0 0.0
        %1010 = vmatpush1.msra.mxu0 0.0
        %1011 = vmatprep.subr.mxu0 0.0
        %1012 = vmatpush1.msra.mxu0 0.0
        %1013 = vmatprep.subr.mxu0 0.0
        %1014 = vmatpush1.msra.mxu0 0.0
        %1015 = vmatprep.subr.mxu0 0.0
        %1016 = vmatpush1.msra.mxu0 0.0
        %1017 = vmatprep.subr.mxu0 0.0
        %1018 = vmatpush1.msra.mxu0 0.0
        %1019 = vmatprep.subr.mxu0 0.0
        %1020 = vmatpush1.msra.mxu0 0.0
        %1021 = vmatprep.subr.mxu0 0.0
        %1022 = vmatpush1.msra.mxu0 0.0
        %1023 = vmatprep.subr.mxu0 0.0
        %1024 = vmatpush1.msra.mxu0 0.0
        %1025 = vmatprep.subr.mxu0 0.0
        %1026 = vmatpush1.msra.mxu0 0.0
        %1027 = vmatprep.subr.mxu0 0.0
        %1028 = vmatpush1.msra.mxu0 %v845
        %1029 = vmatprep.subr.mxu0 0.0
        %1030 = vmatpush1.msra.mxu0 %v844
        %1031 = vmatprep.subr.mxu0 0.0
        %1032 = vmatpush1.msra.mxu0 %v843
        %1033 = vmatprep.subr.mxu0 0.0
        %1034 = vmatpush1.msra.mxu0 %v842
        %1035 = vmatprep.subr.mxu0 0.0
        %1036 = vmatpush1.msra.mxu0 %v841
        %1037 = vmatprep.subr.mxu0 0.0
        %1038 = vmatpush1.msra.mxu0 %v840
        %1039 = vmatprep.subr.mxu0 0.0
        %1040 = vmatpush2.msra.mxu0 0.0
        %1041 = vmatprep.subr.mxu0 0.0
        %1042 = vmatpush2.msra.mxu0 0.0
        %1043 = vmatprep.subr.mxu0 0.0
        %1044 = vmatpush2.msra.mxu0 0.0
        %1045 = vmatprep.subr.mxu0 0.0
        %1046 = vmatpush2.msra.mxu0 0.0
        %1047 = vmatprep.subr.mxu0 0.0
        %1048 = vmatpush2.msra.mxu0 0.0
        %1049 = vmatprep.subr.mxu0 0.0
        %1050 = vmatpush2.msra.mxu0 0.0
        %1051 = vmatprep.subr.mxu0 0.0
        %1052 = vmatpush2.msra.mxu0 0.0
        %1053 = vmatprep.subr.mxu0 0.0
        %1054 = vmatpush2.msra.mxu0 0.0
        %1055 = vmatprep.subr.mxu0 0.0
        %1056 = vmatpush2.msra.mxu0 0.0
        %1057 = vmatprep.subr.mxu0 0.0
        %1058 = vmatpush2.msra.mxu0 0.0
        %1059 = vmatprep.subr.mxu0 0.0
        %1060 = vmatpush2.msra.mxu0 0.0
        %1061 = vmatprep.subr.mxu0 0.0
        %1062 = vmatpush2.msra.mxu0 0.0
        %1063 = vmatprep.subr.mxu0 0.0
        %1064 = vmatpush2.msra.mxu0 0.0
        %1065 = vmatprep.subr.mxu0 0.0
        %1066 = vmatpush2.msra.mxu0 0.0
        %1067 = vmatprep.subr.mxu0 0.0
        %1068 = vmatpush2.msra.mxu0 0.0
        %1069 = vmatprep.subr.mxu0 0.0
        %1070 = vmatpush2.msra.mxu0 0.0
        %1071 = vmatprep.mubr.f32.mxu0 0.0
        %1072 = vmatmul.mubr.f32.gmra.mxu0 %v984
        %v1073 = vpop.f32.mrf.mxu0
        %v1074 = vadd.f32 %v945, %v1073
        %v1075 = vpop.f32.mrf.mxu0
        %1076 = vmatprep.mubr.f32.mxu0 0.0
        %1077 = vmatmul.mubr.f32.gmra.mxu0 %v987
        %v1078 = vpop.f32.mrf.mxu0
        %v1079 = vadd.f32 %v950, %v1078
        %v1080 = vpop.f32.mrf.mxu0
        %1081 = vmatprep.mubr.f32.mxu0 0.0
        %1082 = vmatmul.mubr.f32.gmra.mxu0 %v990
        %v1083 = vpop.f32.mrf.mxu0
        %v1084 = vadd.f32 %v955, %v1083
        %v1085 = vpop.f32.mrf.mxu0
        %1086 = vmatprep.mubr.f32.mxu0 0.0
        %1087 = vmatmul.mubr.f32.gmra.mxu0 %v993
        %v1088 = vpop.f32.mrf.mxu0
        %v1089 = vadd.f32 %v960, %v1088
        %v1090 = vpop.f32.mrf.mxu0
        %1091 = vmatprep.mubr.f32.mxu0 0.0
        %1092 = vmatmul.mubr.f32.gmra.mxu0 %v996
        %v1093 = vpop.f32.mrf.mxu0
        %v1094 = vadd.f32 %v965, %v1093
        %v1095 = vpop.f32.mrf.mxu0
        %1096 = vmatprep.mubr.f32.mxu0 0.0
        %1097 = vmatmul.mubr.f32.gmra.mxu0 %v999
        %v1098 = vpop.f32.mrf.mxu0
        %v1099 = vadd.f32 %v970, %v1098
        %v1100 = vpop.f32.mrf.mxu0
        %1101 = vmatprep.mubr.f32.mxu0 0.0
        %1102 = vmatmul.mubr.f32.gmra.mxu0 %v1002
        %v1103 = vpop.f32.mrf.mxu0
        %v1104 = vadd.f32 %v975, %v1103
        %v1105 = vpop.f32.mrf.mxu0
        %1106 = vmatprep.mubr.f32.mxu0 0.0
        %1107 = vmatmul.mubr.f32.gmra.mxu0 %v1005
        %v1108 = vpop.f32.mrf.mxu0
        %v1109 = vadd.f32 %v980, %v1108
        %v1110 = vpop.f32.mrf.mxu0
        %1111 = vdwg.mxu0
        %s1112 = scalar_lea.vmem %s3, 96
        %v1113 = vld [vmem:[%s1112] sm:$0xff]
        %v1114 = vld [vmem:[%s1112 + $0x8] sm:$0xff]
        %v1115 = vld [vmem:[%s1112 + $0x10] sm:$0xff]
        %v1116 = vld [vmem:[%s1112 + $0x18] sm:$0xff]
        %v1117 = vld [vmem:[%s1112 + $0x20] sm:$0xff]
        %v1118 = vld [vmem:[%s1112 + $0x28] sm:$0xff]
        %v1120 = vsel %vm853, %v832, 0
        %v1123 = vsel %vm853, %v833, 0
        %v1126 = vsel %vm853, %v834, 0
        %v1129 = vsel %vm853, %v835, 0
        %v1132 = vsel %vm853, %v836, 0
        %v1135 = vsel %vm853, %v837, 0
        %v1138 = vsel %vm853, %v838, 0
        %v1141 = vsel %vm853, %v839, 0
        %1143 = vmatprep.subr.mxu0 0.0
        %1144 = vmatpush1.msra.mxu0 0.0
        %1145 = vmatprep.subr.mxu0 0.0
        %1146 = vmatpush1.msra.mxu0 0.0
        %1147 = vmatprep.subr.mxu0 0.0
        %1148 = vmatpush1.msra.mxu0 0.0
        %1149 = vmatprep.subr.mxu0 0.0
        %1150 = vmatpush1.msra.mxu0 0.0
        %1151 = vmatprep.subr.mxu0 0.0
        %1152 = vmatpush1.msra.mxu0 0.0
        %1153 = vmatprep.subr.mxu0 0.0
        %1154 = vmatpush1.msra.mxu0 0.0
        %1155 = vmatprep.subr.mxu0 0.0
        %1156 = vmatpush1.msra.mxu0 0.0
        %1157 = vmatprep.subr.mxu0 0.0
        %1158 = vmatpush1.msra.mxu0 0.0
        %1159 = vmatprep.subr.mxu0 0.0
        %1160 = vmatpush1.msra.mxu0 0.0
        %1161 = vmatprep.subr.mxu0 0.0
        %1162 = vmatpush1.msra.mxu0 0.0
        %1163 = vmatprep.subr.mxu0 0.0
        %1164 = vmatpush1.msra.mxu0 %v1118
        %1165 = vmatprep.subr.mxu0 0.0
        %1166 = vmatpush1.msra.mxu0 %v1117
        %1167 = vmatprep.subr.mxu0 0.0
        %1168 = vmatpush1.msra.mxu0 %v1116
        %1169 = vmatprep.subr.mxu0 0.0
        %1170 = vmatpush1.msra.mxu0 %v1115
        %1171 = vmatprep.subr.mxu0 0.0
        %1172 = vmatpush1.msra.mxu0 %v1114
        %1173 = vmatprep.subr.mxu0 0.0
        %1174 = vmatpush1.msra.mxu0 %v1113
        %1175 = vmatprep.subr.mxu0 0.0
        %1176 = vmatpush2.msra.mxu0 0.0
        %1177 = vmatprep.subr.mxu0 0.0
        %1178 = vmatpush2.msra.mxu0 0.0
        %1179 = vmatprep.subr.mxu0 0.0
        %1180 = vmatpush2.msra.mxu0 0.0
        %1181 = vmatprep.subr.mxu0 0.0
        %1182 = vmatpush2.msra.mxu0 0.0
        %1183 = vmatprep.subr.mxu0 0.0
        %1184 = vmatpush2.msra.mxu0 0.0
        %1185 = vmatprep.subr.mxu0 0.0
        %1186 = vmatpush2.msra.mxu0 0.0
        %1187 = vmatprep.subr.mxu0 0.0
        %1188 = vmatpush2.msra.mxu0 0.0
        %1189 = vmatprep.subr.mxu0 0.0
        %1190 = vmatpush2.msra.mxu0 0.0
        %1191 = vmatprep.subr.mxu0 0.0
        %1192 = vmatpush2.msra.mxu0 0.0
        %1193 = vmatprep.subr.mxu0 0.0
        %1194 = vmatpush2.msra.mxu0 0.0
        %1195 = vmatprep.subr.mxu0 0.0
        %1196 = vmatpush2.msra.mxu0 0.0
        %1197 = vmatprep.subr.mxu0 0.0
        %1198 = vmatpush2.msra.mxu0 0.0
        %1199 = vmatprep.subr.mxu0 0.0
        %1200 = vmatpush2.msra.mxu0 0.0
        %1201 = vmatprep.subr.mxu0 0.0
        %1202 = vmatpush2.msra.mxu0 0.0
        %1203 = vmatprep.subr.mxu0 0.0
        %1204 = vmatpush2.msra.mxu0 0.0
        %1205 = vmatprep.subr.mxu0 0.0
        %1206 = vmatpush2.msra.mxu0 0.0
        %1207 = vmatprep.mubr.f32.mxu0 0.0
        %1208 = vmatmul.mubr.f32.gmra.mxu0 %v1120
        %v1209 = vpop.f32.mrf.mxu0
        %v1210 = vadd.f32 0.0, %v1209
        %v1211 = vpop.f32.mrf.mxu0
        %1212 = vmatprep.mubr.f32.mxu0 0.0
        %1213 = vmatmul.mubr.f32.gmra.mxu0 %v1123
        %v1214 = vpop.f32.mrf.mxu0
        %v1215 = vadd.f32 0.0, %v1214
        %v1216 = vpop.f32.mrf.mxu0
        %1217 = vmatprep.mubr.f32.mxu0 0.0
        %1218 = vmatmul.mubr.f32.gmra.mxu0 %v1126
        %v1219 = vpop.f32.mrf.mxu0
        %v1220 = vadd.f32 0.0, %v1219
        %v1221 = vpop.f32.mrf.mxu0
        %1222 = vmatprep.mubr.f32.mxu0 0.0
        %1223 = vmatmul.mubr.f32.gmra.mxu0 %v1129
        %v1224 = vpop.f32.mrf.mxu0
        %v1225 = vadd.f32 0.0, %v1224
        %v1226 = vpop.f32.mrf.mxu0
        %1227 = vmatprep.mubr.f32.mxu0 0.0
        %1228 = vmatmul.mubr.f32.gmra.mxu0 %v1132
        %v1229 = vpop.f32.mrf.mxu0
        %v1230 = vadd.f32 0.0, %v1229
        %v1231 = vpop.f32.mrf.mxu0
        %1232 = vmatprep.mubr.f32.mxu0 0.0
        %1233 = vmatmul.mubr.f32.gmra.mxu0 %v1135
        %v1234 = vpop.f32.mrf.mxu0
        %v1235 = vadd.f32 0.0, %v1234
        %v1236 = vpop.f32.mrf.mxu0
        %1237 = vmatprep.mubr.f32.mxu0 0.0
        %1238 = vmatmul.mubr.f32.gmra.mxu0 %v1138
        %v1239 = vpop.f32.mrf.mxu0
        %v1240 = vadd.f32 0.0, %v1239
        %v1241 = vpop.f32.mrf.mxu0
        %1242 = vmatprep.mubr.f32.mxu0 0.0
        %1243 = vmatmul.mubr.f32.gmra.mxu0 %v1141
        %v1244 = vpop.f32.mrf.mxu0
        %v1245 = vadd.f32 0.0, %v1244
        %v1246 = vpop.f32.mrf.mxu0
        %1247 = vdwg.mxu0
        %v1248 = vadd.f32 %v1074, %v1210
        %v1249 = vadd.f32 %v1079, %v1215
        %v1250 = vadd.f32 %v1084, %v1220
        %v1251 = vadd.f32 %v1089, %v1225
        %v1252 = vadd.f32 %v1094, %v1230
        %v1253 = vadd.f32 %v1099, %v1235
        %v1254 = vadd.f32 %v1104, %v1240
        %v1255 = vadd.f32 %v1109, %v1245
        %v1256 = vmax.f32 %v1248, 0.0
        %v1257 = vmax.f32 %v1249, 0.0
        %v1258 = vmax.f32 %v1250, 0.0
        %v1259 = vmax.f32 %v1251, 0.0
        %v1260 = vmax.f32 %v1252, 0.0
        %v1261 = vmax.f32 %v1253, 0.0
        %v1262 = vmax.f32 %v1254, 0.0
        %v1263 = vmax.f32 %v1255, 0.0
        %v1264 = vld [vmem:[%s4] sm:$0xff]
        %v1265 = vld [vmem:[%s4 + $0x8] sm:$0xff]
        %v1267 = vsel %vm759, %v1256, 0
        %v1270 = vsel %vm759, %v1257, 0
        %v1273 = vsel %vm759, %v1258, 0
        %v1276 = vsel %vm759, %v1259, 0
        %v1279 = vsel %vm759, %v1260, 0
        %v1282 = vsel %vm759, %v1261, 0
        %v1285 = vsel %vm759, %v1262, 0
        %v1288 = vsel %vm759, %v1263, 0
        %1290 = vmatprep.subr.mxu0 0.0
        %1291 = vmatpush1.msra.mxu0 0.0
        %1292 = vmatprep.subr.mxu0 0.0
        %1293 = vmatpush1.msra.mxu0 0.0
        %1294 = vmatprep.subr.mxu0 0.0
        %1295 = vmatpush1.msra.mxu0 0.0
        %1296 = vmatprep.subr.mxu0 0.0
        %1297 = vmatpush1.msra.mxu0 0.0
        %1298 = vmatprep.subr.mxu0 0.0
        %1299 = vmatpush1.msra.mxu0 0.0
        %1300 = vmatprep.subr.mxu0 0.0
        %1301 = vmatpush1.msra.mxu0 0.0
        %1302 = vmatprep.subr.mxu0 0.0
        %1303 = vmatpush1.msra.mxu0 0.0
        %1304 = vmatprep.subr.mxu0 0.0
        %1305 = vmatpush1.msra.mxu0 0.0
        %1306 = vmatprep.subr.mxu0 0.0
        %1307 = vmatpush1.msra.mxu0 0.0
        %1308 = vmatprep.subr.mxu0 0.0
        %1309 = vmatpush1.msra.mxu0 0.0
        %1310 = vmatprep.subr.mxu0 0.0
        %1311 = vmatpush1.msra.mxu0 0.0
        %1312 = vmatprep.subr.mxu0 0.0
        %1313 = vmatpush1.msra.mxu0 0.0
        %1314 = vmatprep.subr.mxu0 0.0
        %1315 = vmatpush1.msra.mxu0 0.0
        %1316 = vmatprep.subr.mxu0 0.0
        %1317 = vmatpush1.msra.mxu0 0.0
        %1318 = vmatprep.subr.mxu0 0.0
        %1319 = vmatpush1.msra.mxu0 %v1265
        %1320 = vmatprep.subr.mxu0 0.0
        %1321 = vmatpush1.msra.mxu0 %v1264
        %1322 = vmatprep.subr.mxu0 0.0
        %1323 = vmatpush2.msra.mxu0 0.0
        %1324 = vmatprep.subr.mxu0 0.0
        %1325 = vmatpush2.msra.mxu0 0.0
        %1326 = vmatprep.subr.mxu0 0.0
        %1327 = vmatpush2.msra.mxu0 0.0
        %1328 = vmatprep.subr.mxu0 0.0
        %1329 = vmatpush2.msra.mxu0 0.0
        %1330 = vmatprep.subr.mxu0 0.0
        %1331 = vmatpush2.msra.mxu0 0.0
        %1332 = vmatprep.subr.mxu0 0.0
        %1333 = vmatpush2.msra.mxu0 0.0
        %1334 = vmatprep.subr.mxu0 0.0
        %1335 = vmatpush2.msra.mxu0 0.0
        %1336 = vmatprep.subr.mxu0 0.0
        %1337 = vmatpush2.msra.mxu0 0.0
        %1338 = vmatprep.subr.mxu0 0.0
        %1339 = vmatpush2.msra.mxu0 0.0
        %1340 = vmatprep.subr.mxu0 0.0
        %1341 = vmatpush2.msra.mxu0 0.0
        %1342 = vmatprep.subr.mxu0 0.0
        %1343 = vmatpush2.msra.mxu0 0.0
        %1344 = vmatprep.subr.mxu0 0.0
        %1345 = vmatpush2.msra.mxu0 0.0
        %1346 = vmatprep.subr.mxu0 0.0
        %1347 = vmatpush2.msra.mxu0 0.0
        %1348 = vmatprep.subr.mxu0 0.0
        %1349 = vmatpush2.msra.mxu0 0.0
        %1350 = vmatprep.subr.mxu0 0.0
        %1351 = vmatpush2.msra.mxu0 0.0
        %1352 = vmatprep.subr.mxu0 0.0
        %1353 = vmatpush2.msra.mxu0 0.0
        %1354 = vmatprep.mubr.f32.mxu0 0.0
        %1355 = vmatmul.mubr.f32.gmra.mxu0 %v1267
        %v1356 = vpop.f32.mrf.mxu0
        %v1357 = vadd.f32 0.0, %v1356
        %v1358 = vpop.f32.mrf.mxu0
        %1359 = vmatprep.mubr.f32.mxu0 0.0
        %1360 = vmatmul.mubr.f32.gmra.mxu0 %v1270
        %v1361 = vpop.f32.mrf.mxu0
        %v1362 = vadd.f32 0.0, %v1361
        %v1363 = vpop.f32.mrf.mxu0
        %1364 = vmatprep.mubr.f32.mxu0 0.0
        %1365 = vmatmul.mubr.f32.gmra.mxu0 %v1273
        %v1366 = vpop.f32.mrf.mxu0
        %v1367 = vadd.f32 0.0, %v1366
        %v1368 = vpop.f32.mrf.mxu0
        %1369 = vmatprep.mubr.f32.mxu0 0.0
        %1370 = vmatmul.mubr.f32.gmra.mxu0 %v1276
        %v1371 = vpop.f32.mrf.mxu0
        %v1372 = vadd.f32 0.0, %v1371
        %v1373 = vpop.f32.mrf.mxu0
        %1374 = vmatprep.mubr.f32.mxu0 0.0
        %1375 = vmatmul.mubr.f32.gmra.mxu0 %v1279
        %v1376 = vpop.f32.mrf.mxu0
        %v1377 = vadd.f32 0.0, %v1376
        %v1378 = vpop.f32.mrf.mxu0
        %1379 = vmatprep.mubr.f32.mxu0 0.0
        %1380 = vmatmul.mubr.f32.gmra.mxu0 %v1282
        %v1381 = vpop.f32.mrf.mxu0
        %v1382 = vadd.f32 0.0, %v1381
        %v1383 = vpop.f32.mrf.mxu0
        %1384 = vmatprep.mubr.f32.mxu0 0.0
        %1385 = vmatmul.mubr.f32.gmra.mxu0 %v1285
        %v1386 = vpop.f32.mrf.mxu0
        %v1387 = vadd.f32 0.0, %v1386
        %v1388 = vpop.f32.mrf.mxu0
        %1389 = vmatprep.mubr.f32.mxu0 0.0
        %1390 = vmatmul.mubr.f32.gmra.mxu0 %v1288
        %v1391 = vpop.f32.mrf.mxu0
        %v1392 = vadd.f32 0.0, %v1391
        %v1393 = vpop.f32.mrf.mxu0
        %1394 = vdwg.mxu0
        %vm1395 = vcmask 523264
        %v1396 = vsel %vm1395, %v1357, 0.0
        %v1397 = vsel %vm1395, %v1362, 0.0
        %v1398 = vadd.f32 %v1396, %v1397
        %v1399 = vsel %vm1395, %v1367, 0.0
        %v1400 = vadd.f32 %v1398, %v1399
        %v1401 = vsel %vm1395, %v1372, 0.0
        %v1402 = vadd.f32 %v1400, %v1401
        %v1403 = vsel %vm1395, %v1377, 0.0
        %v1404 = vadd.f32 %v1402, %v1403
        %v1405 = vsel %vm1395, %v1382, 0.0
        %v1406 = vadd.f32 %v1404, %v1405
        %v1407 = vsel %vm1395, %v1387, 0.0
        %v1408 = vadd.f32 %v1406, %v1407
        %v1409 = vsel %vm1395, %v1392, 0.0
        %v1410 = vadd.f32 %v1408, %v1409
        %v1411 = vrot.slane %v1410, 4
        %v1412 = vadd.f32 %v1410, %v1411
        %v1413 = vrot.slane %v1412, 2
        %v1414 = vadd.f32 %v1412, %v1413
        %v1415 = vrot.slane %v1414, 1
        %v1416 = vadd.f32 %v1414, %v1415
        %v1417 = vrcp.pop 64.0
        %v1418 = vmul.f32 %v1416, %v1417
        %v1419 = vld [vmem:[%s5] sm:$0xff]
        %v1420 = vld [vmem:[%s5 + $0x8] sm:$0xff]
        %v1421 = vld [vmem:[%s5 + $0x10] sm:$0xff]
        %v1422 = vld [vmem:[%s5 + $0x18] sm:$0xff]
        %v1423 = vld [vmem:[%s5 + $0x20] sm:$0xff]
        %v1424 = vld [vmem:[%s5 + $0x28] sm:$0xff]
        %v1425 = vld [vmem:[%s5 + $0x30] sm:$0xff]
        %v1426 = vld [vmem:[%s5 + $0x38] sm:$0xff]
        %v1427 = vld [vmem:[%s317] sm:$0x1]
        %v1428 = vld [vmem:[%s6] sm:$0xff]
        %vm1429 = vcmask 64512
        %v1431 = vsel %vm1429, %v1427, 0
        %1433 = vmatprep.subr.mxu0 0.0
        %1434 = vmatpush1.msra.mxu0 0.0
        %1435 = vmatprep.subr.mxu0 0.0
        %1436 = vmatpush1.msra.mxu0 0.0
        %1437 = vmatprep.subr.mxu0 0.0
        %1438 = vmatpush1.msra.mxu0 0.0
        %1439 = vmatprep.subr.mxu0 0.0
        %1440 = vmatpush1.msra.mxu0 0.0
        %1441 = vmatprep.subr.mxu0 0.0
        %1442 = vmatpush1.msra.mxu0 0.0
        %1443 = vmatprep.subr.mxu0 0.0
        %1444 = vmatpush1.msra.mxu0 0.0
        %1445 = vmatprep.subr.mxu0 0.0
        %1446 = vmatpush1.msra.mxu0 0.0
        %1447 = vmatprep.subr.mxu0 0.0
        %1448 = vmatpush1.msra.mxu0 0.0
        %1449 = vmatprep.subr.mxu0 0.0
        %1450 = vmatpush1.msra.mxu0 0.0
        %1451 = vmatprep.subr.mxu0 0.0
        %1452 = vmatpush1.msra.mxu0 0.0
        %1453 = vmatprep.subr.mxu0 0.0
        %1454 = vmatpush1.msra.mxu0 0.0
        %1455 = vmatprep.subr.mxu0 0.0
        %1456 = vmatpush1.msra.mxu0 0.0
        %1457 = vmatprep.subr.mxu0 0.0
        %1458 = vmatpush1.msra.mxu0 0.0
        %1459 = vmatprep.subr.mxu0 0.0
        %1460 = vmatpush1.msra.mxu0 0.0
        %1461 = vmatprep.subr.mxu0 0.0
        %1462 = vmatpush1.msra.mxu0 0.0
        %1463 = vmatprep.subr.mxu0 0.0
        %1464 = vmatpush1.msra.mxu0 %v1428
        %1465 = vmatprep.subr.mxu0 0.0
        %1466 = vmatpush2.msra.mxu0 0.0
        %1467 = vmatprep.subr.mxu0 0.0
        %1468 = vmatpush2.msra.mxu0 0.0
        %1469 = vmatprep.subr.mxu0 0.0
        %1470 = vmatpush2.msra.mxu0 0.0
        %1471 = vmatprep.subr.mxu0 0.0
        %1472 = vmatpush2.msra.mxu0 0.0
        %1473 = vmatprep.subr.mxu0 0.0
        %1474 = vmatpush2.msra.mxu0 0.0
        %1475 = vmatprep.subr.mxu0 0.0
        %1476 = vmatpush2.msra.mxu0 0.0
        %1477 = vmatprep.subr.mxu0 0.0
        %1478 = vmatpush2.msra.mxu0 0.0
        %1479 = vmatprep.subr.mxu0 0.0
        %1480 = vmatpush2.msra.mxu0 0.0
        %1481 = vmatprep.subr.mxu0 0.0
        %1482 = vmatpush2.msra.mxu0 0.0
        %1483 = vmatprep.subr.mxu0 0.0
        %1484 = vmatpush2.msra.mxu0 0.0
        %1485 = vmatprep.subr.mxu0 0.0
        %1486 = vmatpush2.msra.mxu0 0.0
        %1487 = vmatprep.subr.mxu0 0.0
        %1488 = vmatpush2.msra.mxu0 0.0
        %1489 = vmatprep.subr.mxu0 0.0
        %1490 = vmatpush2.msra.mxu0 0.0
        %1491 = vmatprep.subr.mxu0 0.0
        %1492 = vmatpush2.msra.mxu0 0.0
        %1493 = vmatprep.subr.mxu0 0.0
        %1494 = vmatpush2.msra.mxu0 0.0
        %1495 = vmatprep.subr.mxu0 0.0
        %1496 = vmatpush2.msra.mxu0 0.0
        %1497 = vmatprep.mubr.f32.mxu0 0.0
        %1498 = vmatmul.mubr.f32.gmra.mxu0 %v1431
        %v1499 = vpop.f32.mrf.mxu0
        %v1500 = vadd.f32 0.0, %v1499
        %v1501 = vpop.f32.mrf.mxu0
        %1502 = vdwg.mxu0
        %v1504 = vsel %vm1395, %v1418, 0
        %1506 = vmatprep.subr.mxu0 0.0
        %1507 = vmatpush1.msra.mxu0 0.0
        %1508 = vmatprep.subr.mxu0 0.0
        %1509 = vmatpush1.msra.mxu0 0.0
        %1510 = vmatprep.subr.mxu0 0.0
        %1511 = vmatpush1.msra.mxu0 0.0
        %1512 = vmatprep.subr.mxu0 0.0
        %1513 = vmatpush1.msra.mxu0 0.0
        %1514 = vmatprep.subr.mxu0 0.0
        %1515 = vmatpush1.msra.mxu0 0.0
        %1516 = vmatprep.subr.mxu0 0.0
        %1517 = vmatpush1.msra.mxu0 0.0
        %1518 = vmatprep.subr.mxu0 0.0
        %1519 = vmatpush1.msra.mxu0 0.0
        %1520 = vmatprep.subr.mxu0 0.0
        %1521 = vmatpush1.msra.mxu0 0.0
        %1522 = vmatprep.subr.mxu0 0.0
        %1523 = vmatpush1.msra.mxu0 %v1426
        %1524 = vmatprep.subr.mxu0 0.0
        %1525 = vmatpush1.msra.mxu0 %v1425
        %1526 = vmatprep.subr.mxu0 0.0
        %1527 = vmatpush1.msra.mxu0 %v1424
        %1528 = vmatprep.subr.mxu0 0.0
        %1529 = vmatpush1.msra.mxu0 %v1423
        %1530 = vmatprep.subr.mxu0 0.0
        %1531 = vmatpush1.msra.mxu0 %v1422
        %1532 = vmatprep.subr.mxu0 0.0
        %1533 = vmatpush1.msra.mxu0 %v1421
        %1534 = vmatprep.subr.mxu0 0.0
        %1535 = vmatpush1.msra.mxu0 %v1420
        %1536 = vmatprep.subr.mxu0 0.0
        %1537 = vmatpush1.msra.mxu0 %v1419
        %1538 = vmatprep.subr.mxu0 0.0
        %1539 = vmatpush2.msra.mxu0 0.0
        %1540 = vmatprep.subr.mxu0 0.0
        %1541 = vmatpush2.msra.mxu0 0.0
        %1542 = vmatprep.subr.mxu0 0.0
        %1543 = vmatpush2.msra.mxu0 0.0
        %1544 = vmatprep.subr.mxu0 0.0
        %1545 = vmatpush2.msra.mxu0 0.0
        %1546 = vmatprep.subr.mxu0 0.0
        %1547 = vmatpush2.msra.mxu0 0.0
        %1548 = vmatprep.subr.mxu0 0.0
        %1549 = vmatpush2.msra.mxu0 0.0
        %1550 = vmatprep.subr.mxu0 0.0
        %1551 = vmatpush2.msra.mxu0 0.0
        %1552 = vmatprep.subr.mxu0 0.0
        %1553 = vmatpush2.msra.mxu0 0.0
        %1554 = vmatprep.subr.mxu0 0.0
        %1555 = vmatpush2.msra.mxu0 0.0
        %1556 = vmatprep.subr.mxu0 0.0
        %1557 = vmatpush2.msra.mxu0 0.0
        %1558 = vmatprep.subr.mxu0 0.0
        %1559 = vmatpush2.msra.mxu0 0.0
        %1560 = vmatprep.subr.mxu0 0.0
        %1561 = vmatpush2.msra.mxu0 0.0
        %1562 = vmatprep.subr.mxu0 0.0
        %1563 = vmatpush2.msra.mxu0 0.0
        %1564 = vmatprep.subr.mxu0 0.0
        %1565 = vmatpush2.msra.mxu0 0.0
        %1566 = vmatprep.subr.mxu0 0.0
        %1567 = vmatpush2.msra.mxu0 0.0
        %1568 = vmatprep.subr.mxu0 0.0
        %1569 = vmatpush2.msra.mxu0 0.0
        %1570 = vmatprep.mubr.f32.mxu0 0.0
        %1571 = vmatmul.mubr.f32.gmra.mxu0 %v1504
        %v1572 = vpop.f32.mrf.mxu0
        %v1573 = vadd.f32 %v1500, %v1572
        %v1574 = vpop.f32.mrf.mxu0
        %1575 = vdwg.mxu0
        %v1576 = vmax.f32 %v1573, 0.0
        %v1577 = vld [vmem:[%s7] sm:$0xf]
        %vm1578 = vcmask 31744
        %v1580 = vsel %vm1578, %v1576, 0
        %vm1582 = vcmask 1043456
        %v1584 = vsel %vm1582, %v1577, 0
        %1586 = vmatprep.subr.mxu0 0.0
        %1587 = vmatpush1.msra.mxu0 0.0
        %1588 = vmatprep.subr.mxu0 0.0
        %1589 = vmatpush1.msra.mxu0 0.0
        %1590 = vmatprep.subr.mxu0 0.0
        %1591 = vmatpush1.msra.mxu0 0.0
        %1592 = vmatprep.subr.mxu0 0.0
        %1593 = vmatpush1.msra.mxu0 0.0
        %1594 = vmatprep.subr.mxu0 0.0
        %1595 = vmatpush1.msra.mxu0 0.0
        %1596 = vmatprep.subr.mxu0 0.0
        %1597 = vmatpush1.msra.mxu0 0.0
        %1598 = vmatprep.subr.mxu0 0.0
        %1599 = vmatpush1.msra.mxu0 0.0
        %1600 = vmatprep.subr.mxu0 0.0
        %1601 = vmatpush1.msra.mxu0 0.0
        %1602 = vmatprep.subr.mxu0 0.0
        %1603 = vmatpush1.msra.mxu0 0.0
        %1604 = vmatprep.subr.mxu0 0.0
        %1605 = vmatpush1.msra.mxu0 0.0
        %1606 = vmatprep.subr.mxu0 0.0
        %1607 = vmatpush1.msra.mxu0 0.0
        %1608 = vmatprep.subr.mxu0 0.0
        %1609 = vmatpush1.msra.mxu0 0.0
        %1610 = vmatprep.subr.mxu0 0.0
        %1611 = vmatpush1.msra.mxu0 0.0
        %1612 = vmatprep.subr.mxu0 0.0
        %1613 = vmatpush1.msra.mxu0 0.0
        %1614 = vmatprep.subr.mxu0 0.0
        %1615 = vmatpush1.msra.mxu0 0.0
        %1616 = vmatprep.subr.mxu0 0.0
        %1617 = vmatpush1.msra.mxu0 %v1584
        %1618 = vmatprep.subr.mxu0 0.0
        %1619 = vmatpush2.msra.mxu0 0.0
        %1620 = vmatprep.subr.mxu0 0.0
        %1621 = vmatpush2.msra.mxu0 0.0
        %1622 = vmatprep.subr.mxu0 0.0
        %1623 = vmatpush2.msra.mxu0 0.0
        %1624 = vmatprep.subr.mxu0 0.0
        %1625 = vmatpush2.msra.mxu0 0.0
        %1626 = vmatprep.subr.mxu0 0.0
        %1627 = vmatpush2.msra.mxu0 0.0
        %1628 = vmatprep.subr.mxu0 0.0
        %1629 = vmatpush2.msra.mxu0 0.0
        %1630 = vmatprep.subr.mxu0 0.0
        %1631 = vmatpush2.msra.mxu0 0.0
        %1632 = vmatprep.subr.mxu0 0.0
        %1633 = vmatpush2.msra.mxu0 0.0
        %1634 = vmatprep.subr.mxu0 0.0
        %1635 = vmatpush2.msra.mxu0 0.0
        %1636 = vmatprep.subr.mxu0 0.0
        %1637 = vmatpush2.msra.mxu0 0.0
        %1638 = vmatprep.subr.mxu0 0.0
        %1639 = vmatpush2.msra.mxu0 0.0
        %1640 = vmatprep.subr.mxu0 0.0
        %1641 = vmatpush2.msra.mxu0 0.0
        %1642 = vmatprep.subr.mxu0 0.0
        %1643 = vmatpush2.msra.mxu0 0.0
        %1644 = vmatprep.subr.mxu0 0.0
        %1645 = vmatpush2.msra.mxu0 0.0
        %1646 = vmatprep.subr.mxu0 0.0
        %1647 = vmatpush2.msra.mxu0 0.0
        %1648 = vmatprep.subr.mxu0 0.0
        %1649 = vmatpush2.msra.mxu0 0.0
        %1650 = vmatprep.mubr.f32.mxu0 0.0
        %1651 = vmatmul.mubr.f32.gmra.mxu0 %v1580
        %v1652 = vpop.f32.mrf.mxu0
        %v1653 = vadd.f32 0.0, %v1652
        %v1654 = vpop.f32.mrf.mxu0
        %1655 = vdwg.mxu0
        %v1656 = vxor.u32 %v1653, 2147483648
        %v1657 = vmul.f32 %v1656, 1.442695
        %v1658 = vpow.pop %v1657
        %v1659 = vadd.f32 %v1658, 1.0
        %v1660 = vrcp.pop %v1659
        %v1661 = vmul.f32 1.0, %v1660
        %v1662 = vlaneseq
        %v1663 = vshrl.u32 %v1662, 7
        %v1664 = vsub.s32 0, %v1663
        %v1665 = vrot.slane %v1661, %v1664
        %v1666 = vmul.f32 %v1357, %v1665
        %v1667 = vmul.f32 %v1362, %v1665
        %v1668 = vmul.f32 %v1367, %v1665
        %v1669 = vmul.f32 %v1372, %v1665
        %v1670 = vmul.f32 %v1377, %v1665
        %v1671 = vmul.f32 %v1382, %v1665
        %v1672 = vmul.f32 %v1387, %v1665
        %v1673 = vmul.f32 %v1392, %v1665
        %v1674 = vadd.f32 %v1666, %v422
        %v1675 = vadd.f32 %v1667, %v427
        %v1676 = vadd.f32 %v1668, %v432
        %v1677 = vadd.f32 %v1669, %v437
        %v1678 = vadd.f32 %v1670, %v442
        %v1679 = vadd.f32 %v1671, %v447
        %v1680 = vadd.f32 %v1672, %v452
        %v1681 = vadd.f32 %v1673, %v457
        %v1682 = vmax.f32 %v1674, 0.0
        %v1683 = vmax.f32 %v1675, 0.0
        %v1684 = vmax.f32 %v1676, 0.0
        %v1685 = vmax.f32 %v1677, 0.0
        %v1686 = vmax.f32 %v1678, 0.0
        %v1687 = vmax.f32 %v1679, 0.0
        %v1688 = vmax.f32 %v1680, 0.0
        %v1689 = vmax.f32 %v1681, 0.0
        %1690 = vst.msk [vmem:[%s309] sm:$0xff] %vm1395, %v1682
        %1691 = vst.msk [vmem:[%s309 + $0x8] sm:$0xff] %vm1395, %v1683
        %1692 = vst.msk [vmem:[%s309 + $0x10] sm:$0xff] %vm1395, %v1684
        %1693 = vst.msk [vmem:[%s309 + $0x18] sm:$0xff] %vm1395, %v1685
        %1694 = vst.msk [vmem:[%s309 + $0x20] sm:$0xff] %vm1395, %v1686
        %1695 = vst.msk [vmem:[%s309 + $0x28] sm:$0xff] %vm1395, %v1687
        %1696 = vst.msk [vmem:[%s309 + $0x30] sm:$0xff] %vm1395, %v1688
        %1697 = vst.msk [vmem:[%s309 + $0x38] sm:$0xff] %vm1395, %v1689
        %s1698 = sand.u32 %s208, 1
        %s1699 = scalar_lea.sflag [#allocation3], %s1698
        %s1700 = sand.u32 %s208, 1
        %s1701 = smul.addr %s1700, 64
        %s1702 = scalar_lea.vmem [#allocation2], %s1701
        // Predicated region
        $region53: #{tpu_custom_call.1} parent=51 // pred_check
          %p1703 = pneg %p218
        $region54: #{tpu_custom_call.1} parent=51 // pred_check_branch
          %1705 = sbr.rel (%p1703) target = $region56
        $region55: #{tpu_custom_call.1} parent=51 // pred_region
          %s1707 = ssub.s32 1024, 1024
          %1708 = vsyncadd %s1699, %s1707
          %s1709 = smul.addr %s22, 8
          %s1710 = smul.addr %s1709, 128
          %s1711 = scalar_lea.hbm %s8, %s1710
          %s1712 = sshll.u32 %s1702, 4
          %s1713 = int_to_ptr.vmem [resolvable:$true] %s1712
          %1718 = dma.vmem_to_hbm [thread:$0]  %s1713, 1024, %s1711, %s1699, 128, 128, 8
        $region56: #{tpu_custom_call.1} parent=51 // pred_fallthru
          _
      $region52: #{tpu_custom_call.1} parent=5 // pred_fallthru
        _
      %p1719 = scmp.le.s32.totalorder 2, %s17
      // Predicated region
      $region57: #{tpu_custom_call.1} parent=5 // pred_check
        %p1720 = pneg %p1719
      $region58: #{tpu_custom_call.1} parent=5 // pred_check_branch
        %1722 = sbr.rel (%p1720) target = $region60
      $region59: #{tpu_custom_call.1} parent=5 // pred_region
        %s1723 = ssub.s32 %s17, 2
        // Predicated region
        $region61: #{tpu_custom_call.1} parent=59 // pred_check
          %p1724 = pneg %p224
        $region62: #{tpu_custom_call.1} parent=59 // pred_check_branch
          %1726 = sbr.rel (%p1724) target = $region64
        $region63: #{tpu_custom_call.1} parent=59 // pred_region
          %s1727 = sand.u32 %s209, 1
          %s1728 = scalar_lea.sflag [#allocation3], %s1727
          %s1729 = sand.u32 %s209, 1
          %s1730 = smul.addr %s1729, 64
          %s1731 = scalar_lea.vmem [#allocation2], %s1730
          %1732 = dma.done %s1728, 1024
        $region64: #{tpu_custom_call.1} parent=59 // pred_fallthru
          _
      $region60: #{tpu_custom_call.1} parent=5 // pred_fallthru
        _
    $region6: #{tpu_custom_call.1} parent=1 // loop_footer
      %s21 = sadd.s32 1, %s17
    $region7: #{tpu_custom_call.1} parent=1 // loop_footer_branch
      %16 = sbr.rel target = $region3
    $region8: #{tpu_custom_call.1} parent=1 // loop_exit
      _
    %1733 = vsyncpa [#allocation3], 1
    %s1734 = scalar_lea.sflag [#allocation3], 1
    %1735 = vsyncpa %s1734, 1

</llo_original>
